<compile_context>
chip_gen: v7x
topology: tpu7x:2x2x1
jax: 0.10.0
libtpu: 0.0.40
codegen_flags: <defaults>
</compile_context>

<pallas_src>
import jax
import jax.numpy as jnp
import numpy as np
from jax import lax
from jax.experimental import pallas as pl
from jax.experimental.pallas import tpu as pltpu

# ---------------- small synthetic config (consistent with RecurrentGemmaConfig) ---------
BATCH = 2
SEQ = 8
HIDDEN = 256                 # hidden_size == num_attention_heads * head_dim
NUM_HEADS = 4                # num_attention_heads
NUM_KV_HEADS = 2             # num_key_value_heads
HEAD_DIM = 64
PARTIAL_ROTARY = 0.5         # partial_rotary_factor
ROPE_THETA = 10000.0
ROT_DIM = int(PARTIAL_ROTARY * HEAD_DIM)
N_REP = NUM_HEADS // NUM_KV_HEADS
SCALE = HEAD_DIM ** -0.5

Q_DIM = NUM_HEADS * HEAD_DIM          # 256
K_DIM = NUM_KV_HEADS * HEAD_DIM       # 128
QK_DIM = Q_DIM + K_DIM                # 384  (columns 0:384   -> [q | k])
V_OFF = QK_DIM                        # 384  (columns 384:512 -> v)
ROTP_OFF = QK_DIM + K_DIM             # 512  (columns 512:896 -> [q@P | k@P])
W_ALL_COLS = ROTP_OFF + QK_DIM        # 896

MASK_VALUE = float(jnp.finfo(jnp.float32).min)


# --------------------------------- fused kernel ------------------------------------------
def _fused_attn_kernel(x_ref, w_all_ref, cos_ref, sin_ref, wo_ref, bo_ref, o_ref):
    # One grid program == one batch element. All intermediates stay in VMEM / vregs.
    T = x_ref.shape[1]
    D = HEAD_DIM

    # ---- qkv projection: single bf16 MXU matmul emits q | k | v | q@P | k@P ----------
    x = x_ref[0]                                                       # (T, H) bf16
    proj = jnp.dot(x, w_all_ref[...],
                   preferred_element_type=jnp.float32)                 # (T, 896) f32

    # ---- partial rotary: lane-dense f32 VPU blend over the [q|k] slab ----------------
    # cos has ones / sin has zeros in the pass-through half and the P-folded columns are
    # zero there, so pass-through dims are left untouched.
    qk = proj[:, :QK_DIM] * cos_ref[...] + proj[:, ROTP_OFF:] * sin_ref[...]   # (T, 384)
    v = proj[:, V_OFF:ROTP_OFF]                                                # (T, 128)

    # ---- head-batched attention, grouped by kv head (implicit repeat_kv) -------------
    # Group g holds q heads [g*N_REP, (g+1)*N_REP); row r*T + t of a group corresponds
    # to (head g*N_REP + r, query position t), so M = N_REP*T per score matmul.
    q_g = jnp.stack(
        [jnp.concatenate([qk[:, (g * N_REP + r) * D:(g * N_REP + r + 1) * D]
                          for r in range(N_REP)], axis=0)
         for g in range(NUM_KV_HEADS)], axis=0)                        # (G, R*T, D)
    k_g = jnp.stack([qk[:, Q_DIM + g * D:Q_DIM + (g + 1) * D]
                     for g in range(NUM_KV_HEADS)], axis=0)            # (G, T, D)
    v_g = jnp.stack([v[:, g * D:(g + 1) * D]
                     for g in range(NUM_KV_HEADS)], axis=0)            # (G, T, D)

    s = jnp.einsum("gqd,gkd->gqk",
                   q_g.astype(jnp.bfloat16), k_g.astype(jnp.bfloat16),
                   preferred_element_type=jnp.float32) * SCALE         # (G, R*T, T) f32

    # Causal additive mask generated in-kernel (query position of row r*T+t is t).
    q_pos = lax.broadcasted_iota(jnp.int32, (T, T), 0)
    k_pos = lax.broadcasted_iota(jnp.int32, (T, T), 1)
    bias = jnp.where(k_pos <= q_pos, 0.0, MASK_VALUE)                  # (T, T)
    s = s + jnp.concatenate([bias] * N_REP, axis=0)                    # (R*T, T), bcast G

    # f32 softmax with EXACT normalization (approx reciprocal caused the prior mismatch).
    m = jnp.max(s, axis=-1, keepdims=True)
    p = jnp.exp(s - m)
    l = jnp.sum(p, axis=-1, keepdims=True)

    o = jnp.einsum("gqk,gkd->gqd",
                   p.astype(jnp.bfloat16), v_g.astype(jnp.bfloat16),
                   preferred_element_type=jnp.float32) / l             # (G, R*T, D) f32

    # ---- o_proj folded as a head-batched matmul + head reduction ---------------------
    # (no concat of half-lane (T,64) tiles; every matmul output is 256-lane dense).
    o_h = o.reshape(NUM_HEADS, T, D)                                   # head h = g*N_REP+r
    out = jnp.einsum("htd,hdk->htk",
                     o_h.astype(jnp.bfloat16), wo_ref[...],
                     preferred_element_type=jnp.float32)               # (NH, T, HIDDEN)
    o_ref[0] = jnp.sum(out, axis=0) + bo_ref[...]                      # lane-dense store


def fused_forward(x, w_all, cos_qk, sin_qk, wo_heads, bo):
    B, T, H = x.shape
    return pl.pallas_call(
        _fused_attn_kernel,
        grid=(B,),
        in_specs=[
            pl.BlockSpec((1, T, H), lambda b: (b, 0, 0)),
            pl.BlockSpec(w_all.shape, lambda b: (0, 0)),        # grid-constant fused weight
            pl.BlockSpec(cos_qk.shape, lambda b: (0, 0)),       # batch-invariant rotary slab
            pl.BlockSpec(sin_qk.shape, lambda b: (0, 0)),
            pl.BlockSpec(wo_heads.shape, lambda b: (0, 0, 0)),  # grid-constant o_proj weight
            pl.BlockSpec(bo.shape, lambda b: (0, 0)),
        ],
        out_specs=pl.BlockSpec((1, T, H), lambda b: (b, 0, 0)),
        out_shape=jax.ShapeDtypeStruct((B, T, H), jnp.float32),
        compiler_params=pltpu.CompilerParams(
            dimension_semantics=("parallel",)),   # >=2 programs -> v7x can use both TCs
    )(x, w_all, cos_qk, sin_qk, wo_heads, bo)
    # TODO(synk): at real model shapes (T~2048, hidden~2560) add a q-row grid axis
    #             (256-512 row tiles), stream K/V flash-style along an "arbitrary" axis,
    #             set vmem_limit_bytes via CompilerParams, and single-buffer the
    #             grid-constant weight blocks (pipeline_mode=pl.Buffered(1)) so the kernel
    #             fits v7x's 64 MiB VMEM with pipelining headroom.


# --------------------------------- glue ---------------------------------------------------
def rotary_cos_sin(position_ids, rot_dim, base, dtype):
    # RecurrentGemmaRotaryEmbedding.forward
    inv_freq = 1.0 / (base ** (jnp.arange(0, rot_dim, 2, dtype=jnp.float32) / rot_dim))
    freqs = position_ids[:, :, None].astype(jnp.float32) * inv_freq[None, None, :]
    emb = jnp.concatenate([freqs, freqs], axis=-1)                      # (B, T, rot_dim)
    return jnp.cos(emb).astype(dtype), jnp.sin(emb).astype(dtype)


def make_rot_half_matrix(head_dim, rot_dim):
    # signed permutation so that (x @ P)[:, :rot_dim] == rotate_half(x[:, :rot_dim])
    # and (x @ P)[:, rot_dim:] == 0  (pass-through columns are zero).
    P = np.zeros((head_dim, head_dim), np.float32)
    half = rot_dim // 2
    for j in range(half):
        P[j + half, j] = -1.0
    for j in range(half, rot_dim):
        P[j - half, j] = 1.0
    return jnp.asarray(P)


def fold_rotary_into_weights(wq, wk):
    # wqP = wq @ blockdiag(P, ..., P)  (per head), likewise for wk.
    P = make_rot_half_matrix(HEAD_DIM, ROT_DIM)
    wqP = jnp.einsum("ihd,de->ihe",
                     wq.reshape(HIDDEN, NUM_HEADS, HEAD_DIM), P).reshape(HIDDEN, Q_DIM)
    wkP = jnp.einsum("ihd,de->ihe",
                     wk.reshape(HIDDEN, NUM_KV_HEADS, HEAD_DIM), P).reshape(HIDDEN, K_DIM)
    return wqP, wkP


def recurrent_gemma_sdpa_attention(x, params, position_ids):
    B, T, _ = x.shape
    wq, wk, wv = params["wq"], params["wk"], params["wv"]
    wqP, wkP = fold_rotary_into_weights(wq, wk)
    # fused projection weight [q | k | v | q@P | k@P], bf16 for the MXU
    w_all = jnp.concatenate([wq, wk, wv, wqP, wkP], axis=1).astype(jnp.bfloat16)  # (H, 896)
    wo_heads = params["wo"].reshape(NUM_HEADS, HEAD_DIM, HIDDEN).astype(jnp.bfloat16)

    # Rotary phases are batch-invariant here (position_ids rows identical); build ONE
    # (T, 384) slab that stays resident across grid programs (constant index_map).
    cos, sin = rotary_cos_sin(position_ids[:1], ROT_DIM, ROPE_THETA, jnp.float32)
    cos, sin = cos[0], sin[0]                                       # (T, 32)
    ones = jnp.ones((T, HEAD_DIM - ROT_DIM), jnp.float32)
    zeros = jnp.zeros((T, HEAD_DIM - ROT_DIM), jnp.float32)
    cos_h = jnp.concatenate([cos, ones], axis=-1)                   # (T, 64) per head
    sin_h = jnp.concatenate([sin, zeros], axis=-1)
    cos_qk = jnp.concatenate([jnp.tile(cos_h, (1, NUM_HEADS)),
                              jnp.tile(cos_h, (1, NUM_KV_HEADS))], axis=-1)   # (T, 384)
    sin_qk = jnp.concatenate([jnp.tile(sin_h, (1, NUM_HEADS)),
                              jnp.tile(sin_h, (1, NUM_KV_HEADS))], axis=-1)

    return fused_forward(x.astype(jnp.bfloat16), w_all, cos_qk, sin_qk,
                         wo_heads, params["bo"])


# ------------------------------ pure-JAX reference ---------------------------------------
def reference_forward(x, params, position_ids, attention_mask):
    with jax.default_matmul_precision("highest"):
        B, T, H = x.shape
        q = x @ params["wq"]
        k = x @ params["wk"]
        v = x @ params["wv"]
        q = q.reshape(B, T, NUM_HEADS, HEAD_DIM).transpose(0, 2, 1, 3)
        k = k.reshape(B, T, NUM_KV_HEADS, HEAD_DIM).transpose(0, 2, 1, 3)
        v = v.reshape(B, T, NUM_KV_HEADS, HEAD_DIM).transpose(0, 2, 1, 3)

        cos, sin = rotary_cos_sin(position_ids, ROT_DIM, ROPE_THETA, x.dtype)
        cos_u, sin_u = cos[:, None], sin[:, None]

        def rot_half(t):
            t1, t2 = t[..., : t.shape[-1] // 2], t[..., t.shape[-1] // 2:]
            return jnp.concatenate([-t2, t1], axis=-1)

        q_rot, q_pass = q[..., :ROT_DIM], q[..., ROT_DIM:]
        k_rot, k_pass = k[..., :ROT_DIM], k[..., ROT_DIM:]
        q_rot = q_rot * cos_u + rot_half(q_rot) * sin_u
        k_rot = k_rot * cos_u + rot_half(k_rot) * sin_u
        q = jnp.concatenate([q_rot, q_pass], axis=-1)
        k = jnp.concatenate([k_rot, k_pass], axis=-1)

        k = jnp.repeat(k, N_REP, axis=1)
        v = jnp.repeat(v, N_REP, axis=1)

        scores = jnp.einsum("bhqd,bhkd->bhqk", q, k) * SCALE + attention_mask
        probs = jax.nn.softmax(scores, axis=-1)
        attn = jnp.einsum("bhqk,bhkd->bhqd", probs, v)
        attn = attn.transpose(0, 2, 1, 3).reshape(B, T, NUM_HEADS * HEAD_DIM)
        return attn @ params["wo"] + params["bo"]


# ---------------------------------- main --------------------------------------------------
if __name__ == "__main__":
    key = jax.random.PRNGKey(0)
    kx, kq, kk, kv, ko, kb = jax.random.split(key, 6)

    x = jax.random.normal(kx, (BATCH, SEQ, HIDDEN), jnp.float32)
    params = {
        # weights stored as [in, out] (i.e. torch Linear weight transposed)
        "wq": jax.random.normal(kq, (HIDDEN, NUM_HEADS * HEAD_DIM), jnp.float32) * (HIDDEN ** -0.5),
        "wk": jax.random.normal(kk, (HIDDEN, NUM_KV_HEADS * HEAD_DIM), jnp.float32) * (HIDDEN ** -0.5),
        "wv": jax.random.normal(kv, (HIDDEN, NUM_KV_HEADS * HEAD_DIM), jnp.float32) * (HIDDEN ** -0.5),
        "wo": jax.random.normal(ko, (NUM_HEADS * HEAD_DIM, HIDDEN), jnp.float32)
              * ((NUM_HEADS * HEAD_DIM) ** -0.5),
        "bo": jax.random.normal(kb, (1, HIDDEN), jnp.float32) * 0.01,
    }

    position_ids = jnp.broadcast_to(jnp.arange(SEQ)[None, :], (BATCH, SEQ)).astype(jnp.int32)

    # the kernel generates the causal mask in-kernel; the reference uses the explicit
    # HF-style additive float mask (0 = keep, finfo.min = masked)
    causal = jnp.tril(jnp.ones((SEQ, SEQ), dtype=bool))
    mask = jnp.where(causal, 0.0, jnp.finfo(jnp.float32).min).astype(jnp.float32)
    mask = jnp.broadcast_to(mask[None, None], (BATCH, 1, SEQ, SEQ))

    out = jax.block_until_ready(
        recurrent_gemma_sdpa_attention(x, params, position_ids))

    ref = reference_forward(x, params, position_ids, mask)
    # tolerance accounts for bf16 MXU inputs (f32 accumulation, f32 rotary/softmax);
    # measured error is ~3e-3 sigma, so 2e-2 is a comfortable margin.
    np.testing.assert_allclose(np.asarray(out), np.asarray(ref), rtol=2e-2, atol=2e-2)

    print("KERNEL_OK")
</pallas_src>

<mosaic_0001>
module attributes {stable_mosaic.version = 11 : i64} {
  func.func @_fused_attn_kernel(%arg0: i32, %arg1: memref<1x8x256xbf16, #tpu.memory_space<vmem>>, %arg2: memref<256x896xbf16, #tpu.memory_space<vmem>>, %arg3: memref<8x384xf32, #tpu.memory_space<vmem>>, %arg4: memref<8x384xf32, #tpu.memory_space<vmem>>, %arg5: memref<4x64x256xbf16, #tpu.memory_space<vmem>>, %arg6: memref<1x256xf32, #tpu.memory_space<vmem>>, %arg7: memref<1x8x256xf32, #tpu.memory_space<vmem>>) attributes {dimension_semantics = [#tpu.dimension_semantics<parallel>], iteration_bounds = array<i64: 2>, scalar_prefetch = 0 : i64, scratch_operands = 0 : i64, tpu.core_type = #tpu.core_type<tc>, window_params = [{transform_indices = @transform_0, window_bounds = array<i64: 1, 8, 256>}, {pipeline_mode = #tpu.pipeline_mode<synchronous>, transform_indices = @transform_1, window_bounds = array<i64: 256, 896>}, {pipeline_mode = #tpu.pipeline_mode<synchronous>, transform_indices = @transform_2, window_bounds = array<i64: 8, 384>}, {pipeline_mode = #tpu.pipeline_mode<synchronous>, transform_indices = @transform_3, window_bounds = array<i64: 8, 384>}, {pipeline_mode = #tpu.pipeline_mode<synchronous>, transform_indices = @transform_4, window_bounds = array<i64: 4, 64, 256>}, {pipeline_mode = #tpu.pipeline_mode<synchronous>, transform_indices = @transform_5, window_bounds = array<i64: 1, 256>}, {transform_indices = @transform_6, window_bounds = array<i64: 1, 8, 256>}]} {
    %c0 = arith.constant 0 : index
    %c0_0 = arith.constant 0 : index
    %c0_1 = arith.constant 0 : index
    %0 = vector.load %arg1[%c0, %c0_0, %c0_1] : memref<1x8x256xbf16, #tpu.memory_space<vmem>>, vector<1x8x256xbf16>
    %1 = vector.shape_cast %0 : vector<1x8x256xbf16> to vector<8x256xbf16>
    %c0_2 = arith.constant 0 : index
    %c0_3 = arith.constant 0 : index
    %2 = vector.load %arg2[%c0_2, %c0_3] : memref<256x896xbf16, #tpu.memory_space<vmem>>, vector<256x896xbf16>
    %cst = arith.constant dense<0.000000e+00> : vector<8x896xf32>
    %3 = tpu.matmul %1, %2, %cst {dimension_numbers = #tpu.dot_dimension_numbers<[1], [0], [0], [1], [0, 0, 1, 1], [], []>} : vector<8x256xbf16>, vector<256x896xbf16>, vector<8x896xf32> -> vector<8x896xf32>
    %4 = vector.extract_strided_slice %3 {offsets = [0, 0], sizes = [8, 384], strides = [1, 1]} : vector<8x896xf32> to vector<8x384xf32>
    %c0_4 = arith.constant 0 : index
    %c0_5 = arith.constant 0 : index
    %5 = vector.load %arg3[%c0_4, %c0_5] : memref<8x384xf32, #tpu.memory_space<vmem>>, vector<8x384xf32>
    %6 = arith.mulf %4, %5 : vector<8x384xf32>
    %7 = vector.extract_strided_slice %3 {offsets = [0, 512], sizes = [8, 384], strides = [1, 1]} : vector<8x896xf32> to vector<8x384xf32>
    %c0_6 = arith.constant 0 : index
    %c0_7 = arith.constant 0 : index
    %8 = vector.load %arg4[%c0_6, %c0_7] : memref<8x384xf32, #tpu.memory_space<vmem>>, vector<8x384xf32>
    %9 = arith.mulf %7, %8 : vector<8x384xf32>
    %10 = arith.addf %6, %9 : vector<8x384xf32>
    %11 = vector.extract_strided_slice %3 {offsets = [0, 384], sizes = [8, 128], strides = [1, 1]} : vector<8x896xf32> to vector<8x128xf32>
    %12 = vector.extract_strided_slice %10 {offsets = [0, 0], sizes = [8, 64], strides = [1, 1]} : vector<8x384xf32> to vector<8x64xf32>
    %13 = vector.extract_strided_slice %10 {offsets = [0, 64], sizes = [8, 64], strides = [1, 1]} : vector<8x384xf32> to vector<8x64xf32>
    %14 = tpu.concatenate %12, %13 in 0 : vector<8x64xf32>, vector<8x64xf32> -> vector<16x64xf32>
    %15 = vector.extract_strided_slice %10 {offsets = [0, 128], sizes = [8, 64], strides = [1, 1]} : vector<8x384xf32> to vector<8x64xf32>
    %16 = vector.extract_strided_slice %10 {offsets = [0, 192], sizes = [8, 64], strides = [1, 1]} : vector<8x384xf32> to vector<8x64xf32>
    %17 = tpu.concatenate %15, %16 in 0 : vector<8x64xf32>, vector<8x64xf32> -> vector<16x64xf32>
    %18 = vector.shape_cast %14 : vector<16x64xf32> to vector<1x16x64xf32>
    %19 = vector.shape_cast %17 : vector<16x64xf32> to vector<1x16x64xf32>
    %20 = tpu.concatenate %18, %19 in 0 : vector<1x16x64xf32>, vector<1x16x64xf32> -> vector<2x16x64xf32>
    %21 = vector.extract_strided_slice %10 {offsets = [0, 256], sizes = [8, 64], strides = [1, 1]} : vector<8x384xf32> to vector<8x64xf32>
    %22 = vector.extract_strided_slice %10 {offsets = [0, 320], sizes = [8, 64], strides = [1, 1]} : vector<8x384xf32> to vector<8x64xf32>
    %23 = vector.shape_cast %21 : vector<8x64xf32> to vector<1x8x64xf32>
    %24 = vector.shape_cast %22 : vector<8x64xf32> to vector<1x8x64xf32>
    %25 = tpu.concatenate %23, %24 in 0 : vector<1x8x64xf32>, vector<1x8x64xf32> -> vector<2x8x64xf32>
    %26 = vector.extract_strided_slice %11 {offsets = [0, 0], sizes = [8, 64], strides = [1, 1]} : vector<8x128xf32> to vector<8x64xf32>
    %27 = vector.extract_strided_slice %11 {offsets = [0, 64], sizes = [8, 64], strides = [1, 1]} : vector<8x128xf32> to vector<8x64xf32>
    %28 = vector.shape_cast %26 : vector<8x64xf32> to vector<1x8x64xf32>
    %29 = vector.shape_cast %27 : vector<8x64xf32> to vector<1x8x64xf32>
    %30 = tpu.concatenate %28, %29 in 0 : vector<1x8x64xf32>, vector<1x8x64xf32> -> vector<2x8x64xf32>
    %31 = arith.truncf %20 : vector<2x16x64xf32> to vector<2x16x64xbf16>
    %32 = arith.truncf %25 : vector<2x8x64xf32> to vector<2x8x64xbf16>
    "tpu.trace_start"() <{level = 10 : i32, message = "gqd,gkd->gqk"}> : () -> ()
    %cst_8 = arith.constant dense<0.000000e+00> : vector<2x16x8xf32>
    %33 = tpu.matmul %31, %32, %cst_8 {dimension_numbers = #tpu.dot_dimension_numbers<[2], [2], [1], [1], [0, 0, 0, 1, 1, 1], [0], [0]>} : vector<2x16x64xbf16>, vector<2x8x64xbf16>, vector<2x16x8xf32> -> vector<2x16x8xf32>
    "tpu.trace_stop"() : () -> ()
    %cst_9 = arith.constant 1.250000e-01 : f32
    %34 = vector.broadcast %cst_9 : f32 to vector<2x16x8xf32>
    %35 = arith.mulf %33, %34 : vector<2x16x8xf32>
    %36 = tpu.iota {dimensions = array<i32: 0>} : vector<8x8xi32>
    %37 = tpu.iota {dimensions = array<i32: 1>} : vector<8x8xi32>
    %38 = arith.cmpi sle, %37, %36 : vector<8x8xi32>
    %cst_10 = arith.constant 0.000000e+00 : f32
    %cst_11 = arith.constant -3.40282347E+38 : f32
    %39 = vector.broadcast %cst_10 : f32 to vector<8x8xf32>
    %40 = vector.broadcast %cst_11 : f32 to vector<8x8xf32>
    %41 = arith.select %38, %39, %40 : vector<8x8xi1>, vector<8x8xf32>
    %42 = tpu.concatenate %41, %41 in 0 : vector<8x8xf32>, vector<8x8xf32> -> vector<16x8xf32>
    %43 = vector.shape_cast %42 : vector<16x8xf32> to vector<1x16x8xf32>
    %44 = vector.broadcast %43 : vector<1x16x8xf32> to vector<2x16x8xf32>
    %45 = arith.addf %35, %44 : vector<2x16x8xf32>
    %cst_12 = arith.constant dense<0xFF800000> : vector<2x16xf32>
    %46 = vector.multi_reduction <maximumf>, %45, %cst_12 [2] : vector<2x16x8xf32> to vector<2x16xf32>
    %47 = vector.shape_cast %46 : vector<2x16xf32> to vector<2x16x1xf32>
    %48 = vector.broadcast %47 : vector<2x16x1xf32> to vector<2x16x8xf32>
    %49 = arith.subf %45, %48 : vector<2x16x8xf32>
    %50 = math.exp %49 : vector<2x16x8xf32>
    %cst_13 = arith.constant dense<0.000000e+00> : vector<2x16xf32>
    %51 = vector.multi_reduction <add>, %50, %cst_13 [2] : vector<2x16x8xf32> to vector<2x16xf32>
    %52 = vector.shape_cast %51 : vector<2x16xf32> to vector<2x16x1xf32>
    %53 = arith.truncf %50 : vector<2x16x8xf32> to vector<2x16x8xbf16>
    %54 = arith.truncf %30 : vector<2x8x64xf32> to vector<2x8x64xbf16>
    "tpu.trace_start"() <{level = 10 : i32, message = "gqk,gkd->gqd"}> : () -> ()
    %cst_14 = arith.constant dense<0.000000e+00> : vector<2x16x64xf32>
    %55 = tpu.matmul %53, %54, %cst_14 {dimension_numbers = #tpu.dot_dimension_numbers<[2], [1], [1], [2], [0, 0, 0, 1, 1, 2], [0], [0]>} : vector<2x16x8xbf16>, vector<2x8x64xbf16>, vector<2x16x64xf32> -> vector<2x16x64xf32>
    "tpu.trace_stop"() : () -> ()
    %56 = vector.broadcast %52 : vector<2x16x1xf32> to vector<2x16x64xf32>
    %57 = arith.divf %55, %56 : vector<2x16x64xf32>
    %58 = vector.shape_cast %57 : vector<2x16x64xf32> to vector<4x8x64xf32>
    %59 = arith.truncf %58 : vector<4x8x64xf32> to vector<4x8x64xbf16>
    %c0_15 = arith.constant 0 : index
    %c0_16 = arith.constant 0 : index
    %c0_17 = arith.constant 0 : index
    %60 = vector.load %arg5[%c0_15, %c0_16, %c0_17] : memref<4x64x256xbf16, #tpu.memory_space<vmem>>, vector<4x64x256xbf16>
    "tpu.trace_start"() <{level = 10 : i32, message = "htd,hdk->htk"}> : () -> ()
    %cst_18 = arith.constant dense<0.000000e+00> : vector<4x8x256xf32>
    %61 = tpu.matmul %59, %60, %cst_18 {dimension_numbers = #tpu.dot_dimension_numbers<[2], [1], [1], [2], [0, 0, 0, 1, 1, 2], [0], [0]>} : vector<4x8x64xbf16>, vector<4x64x256xbf16>, vector<4x8x256xf32> -> vector<4x8x256xf32>
    "tpu.trace_stop"() : () -> ()
    %cst_19 = arith.constant dense<0.000000e+00> : vector<8x256xf32>
    %62 = vector.multi_reduction <add>, %61, %cst_19 [0] : vector<4x8x256xf32> to vector<8x256xf32>
    %c0_20 = arith.constant 0 : index
    %c0_21 = arith.constant 0 : index
    %63 = vector.load %arg6[%c0_20, %c0_21] : memref<1x256xf32, #tpu.memory_space<vmem>>, vector<1x256xf32>
    %64 = vector.broadcast %63 : vector<1x256xf32> to vector<8x256xf32>
    %65 = arith.addf %62, %64 : vector<8x256xf32>
    %c0_22 = arith.constant 0 : index
    %c0_23 = arith.constant 0 : index
    %c0_24 = arith.constant 0 : index
    %66 = vector.load %arg7[%c0_22, %c0_23, %c0_24] : memref<1x8x256xf32, #tpu.memory_space<vmem>>, vector<1x8x256xf32>
    %67 = vector.shape_cast %66 : vector<1x8x256xf32> to vector<8x256xf32>
    %68 = vector.shape_cast %65 : vector<8x256xf32> to vector<1x8x256xf32>
    tpu.vector_store %arg7[%c0_22, %c0_23, %c0_24], %68 {strides = array<i32>} : memref<1x8x256xf32, #tpu.memory_space<vmem>>, vector<1x8x256xf32>,
    return
  }
  func.func @transform_0(%arg0: i32) -> (i32, i32, i32) {
    %c0_i32 = arith.constant 0 : i32
    %c0_i32_0 = arith.constant 0 : i32
    %c0_i32_1 = arith.constant 0 : i32
    return %arg0, %c0_i32, %c0_i32_0 : i32, i32, i32
  }
  func.func @transform_1(%arg0: i32) -> (i32, i32) {
    %c0_i32 = arith.constant 0 : i32
    %c0_i32_0 = arith.constant 0 : i32
    %c0_i32_1 = arith.constant 0 : i32
    return %c0_i32, %c0_i32_0 : i32, i32
  }
  func.func @transform_2(%arg0: i32) -> (i32, i32) {
    %c0_i32 = arith.constant 0 : i32
    %c0_i32_0 = arith.constant 0 : i32
    %c0_i32_1 = arith.constant 0 : i32
    return %c0_i32, %c0_i32_0 : i32, i32
  }
  func.func @transform_3(%arg0: i32) -> (i32, i32) {
    %c0_i32 = arith.constant 0 : i32
    %c0_i32_0 = arith.constant 0 : i32
    %c0_i32_1 = arith.constant 0 : i32
    return %c0_i32, %c0_i32_0 : i32, i32
  }
  func.func @transform_4(%arg0: i32) -> (i32, i32, i32) {
    %c0_i32 = arith.constant 0 : i32
    %c0_i32_0 = arith.constant 0 : i32
    %c0_i32_1 = arith.constant 0 : i32
    %c0_i32_2 = arith.constant 0 : i32
    return %c0_i32, %c0_i32_0, %c0_i32_1 : i32, i32, i32
  }
  func.func @transform_5(%arg0: i32) -> (i32, i32) {
    %c0_i32 = arith.constant 0 : i32
    %c0_i32_0 = arith.constant 0 : i32
    %c0_i32_1 = arith.constant 0 : i32
    return %c0_i32, %c0_i32_0 : i32, i32
  }
  func.func @transform_6(%arg0: i32) -> (i32, i32, i32) {
    %c0_i32 = arith.constant 0 : i32
    %c0_i32_0 = arith.constant 0 : i32
    %c0_i32_1 = arith.constant 0 : i32
    return %arg0, %c0_i32, %c0_i32_0 : i32, i32, i32
  }
}

</mosaic_0001>

<llo_original>
// kernel: tpu_custom_call.1
$region0: #{tpu_custom_call.1}
  #allocation0 [shape = 'u32[]', space=smem, size = 0x4, offset = 0x4, fixed_abs, tag = 'smem constant byte address 0x4 - core index']
  #allocation1 [shape = 'u32[144,128]{1,0:T(1,128)}', space=vmem, size = 0x12000, scoped, tag = 'internal scratch']
  %s0 = inlined_call_operand.hbm [shape: bf16[2,8,256], index: 0, kind: input, shape index: {}]
  %s1 = inlined_call_operand.hbm [shape: bf16[256,896], index: 1, kind: input, shape index: {}]
  %s2 = inlined_call_operand.hbm [shape: f32[8,384], index: 2, kind: input, shape index: {}]
  %s3 = inlined_call_operand.hbm [shape: f32[8,384], index: 3, kind: input, shape index: {}]
  %s4 = inlined_call_operand.hbm [shape: bf16[4,64,256], index: 4, kind: input, shape index: {}]
  %s5 = inlined_call_operand.vmem [shape: f32[1,256], index: 5, kind: input, shape index: {}]
  %s6 = inlined_call_operand.hbm [shape: f32[2,8,256], index: 6, kind: output, shape index: {}]
  %s7 = sld [smem:[#allocation0]]
  $region77: #{tpu_custom_call.1} parent=0
    _
  %s9 = ssub.s32 1, %s7
  %s10 = scalar_select 0, %s9, %s7
  $region1: #{tpu_custom_call.1} parent=0
    #allocation2 [shape = 'u8[8192]{0}', space=vmem, size = 0x2000, scoped, tag = 'input window, operand 0']
    #allocation3 [shape = 's32[2]{0}', space=sflag, size = 0x8, scoped, tag = 'scoped memory for tpu_custom_call.1']
    #allocation4 [shape = 's32[2]{0}', space=sflag, size = 0x8, scoped, tag = 'scoped memory for tpu_custom_call.1']
    #allocation5 [shape = 'u8[458752]{0}', space=vmem, size = 0x70000, scoped, tag = 'input window, operand 1, single buffered']
    #allocation6 [shape = 's32[1]{0}', space=sflag, size = 0x4, scoped, tag = 'scoped memory for tpu_custom_call.1']
    #allocation7 [shape = 'u8[12288]{0}', space=vmem, size = 0x3000, scoped, tag = 'input window, operand 2, single buffered']
    #allocation8 [shape = 'u8[12288]{0}', space=vmem, size = 0x3000, scoped, tag = 'input window, operand 3, single buffered']
    #allocation9 [shape = 's32[1]{0}', space=sflag, size = 0x4, scoped, tag = 'scoped memory for tpu_custom_call.1']
    #allocation10 [shape = 'u8[131072]{0}', space=vmem, size = 0x20000, scoped, tag = 'input window, operand 4, single buffered']
    #allocation11 [shape = 'u8[16384]{0}', space=vmem, size = 0x4000, scoped, tag = 'output window, operand 0']
    %11 = vsyncpa [#allocation3], 0
    %s12 = scalar_lea.sflag [#allocation3], 1
    %13 = vsyncpa %s12, 0
    %14 = vsyncpa [#allocation6], 0
    %15 = vsyncpa [#allocation9], 0
    %16 = vsyncpa [#allocation4], 0
    %s17 = scalar_lea.sflag [#allocation4], 1
    %18 = vsyncpa %s17, 0
    loop: start=0, step=1, limit=4
    $region2: #{tpu_custom_call.1} parent=1 // loop_pre_header
      _
    $region3: #{tpu_custom_call.1} parent=1 // loop_header
      %s20 = sphi 0, %s24
      %p21 = scmp.ge.s32.totalorder %s20, 4
      %s30 = sphi 0, %s32
      %s33 = sphi 0, %s30
      %s34 = sphi 0, %s33
      %s50 = sphi 0, %s34
      %s54 = sphi 0, %s54
      %s56 = sphi 0, %s54
      %s57 = sphi 0, %s56
      %s71 = sphi 0, %s57
      %s75 = sphi 0, %s75
      %s77 = sphi 0, %s75
      %s78 = sphi 0, %s77
      %s92 = sphi 0, %s78
      %s96 = sphi 0, %s96
      %s98 = sphi 0, %s96
      %s99 = sphi 0, %s98
      %s113 = sphi 0, %s99
      %s117 = sphi 0, %s117
      %s119 = sphi 0, %s117
      %s120 = sphi 0, %s119
      %s134 = sphi 0, %s120
      %s138 = sphi 0, %s138
      %s140 = sphi 0, %s138
      %s141 = sphi 0, %s140
      %s155 = sphi 0, %s141
      %s161 = sphi 0, %s163
      %s164 = sphi 0, %s161
      %s165 = sphi 0, %s164
      %s181 = sphi 0, %s165
    $region4: #{tpu_custom_call.1} parent=1 // loop_header_branch
      %23 = sbr.rel (%p21) target = $region8
    $region5: #{tpu_custom_call.1} parent=1 // loop_body
      %s25 = ssub.s32 %s20, 1
      %s26 = ssub.s32 %s20, 2
      %s27 = sadd.s32 %s20, 1
      %s28 = ssub.s32 %s20, %s27
      %p29 = scmp.eq.s32.totalorder %s28, 0
      %s31 = sadd.s32 %s30, 1
      %s32 = scalar_select %p29, %s30, %s31
      %p35 = pneg %p29
      %p36 = scmp.eq.s32.totalorder %s20, 1
      %p37 = por %p35, %p36
      %p38 = scmp.ne.s32.totalorder %s30, %s33
      %p39 = scmp.eq.s32.totalorder %s20, 0
      %p40 = por %p38, %p39
      %p41 = scmp.ne.s32.totalorder %s30, %s33
      %p42 = scmp.eq.s32.totalorder %s25, 1
      %p43 = por %p41, %p42
      %p44 = scmp.ne.s32.totalorder %s33, %s34
      %p45 = scmp.eq.s32.totalorder %s25, 0
      %p46 = por %p44, %p45
      %p47 = scmp.ne.s32.totalorder %s33, %s34
      %p48 = scmp.eq.s32.totalorder %s26, 1
      %p49 = por %p47, %p48
      %p51 = scmp.ne.s32.totalorder %s34, %s50
      %p52 = scmp.eq.s32.totalorder %s26, 0
      %p53 = por %p51, %p52
      %s55 = sadd.s32 %s54, 1
      %p58 = scmp.eq.s32.totalorder %s20, 1
      %p59 = scmp.ne.s32.totalorder %s54, %s56
      %p60 = scmp.eq.s32.totalorder %s20, 0
      %p61 = por %p59, %p60
      %p62 = scmp.ne.s32.totalorder %s54, %s56
      %p63 = scmp.eq.s32.totalorder %s25, 1
      %p64 = por %p62, %p63
      %p65 = scmp.ne.s32.totalorder %s56, %s57
      %p66 = scmp.eq.s32.totalorder %s25, 0
      %p67 = por %p65, %p66
      %p68 = scmp.ne.s32.totalorder %s56, %s57
      %p69 = scmp.eq.s32.totalorder %s26, 1
      %p70 = por %p68, %p69
      %p72 = scmp.ne.s32.totalorder %s57, %s71
      %p73 = scmp.eq.s32.totalorder %s26, 0
      %p74 = por %p72, %p73
      %s76 = sadd.s32 %s75, 1
      %p79 = scmp.eq.s32.totalorder %s20, 1
      %p80 = scmp.ne.s32.totalorder %s75, %s77
      %p81 = scmp.eq.s32.totalorder %s20, 0
      %p82 = por %p80, %p81
      %p83 = scmp.ne.s32.totalorder %s75, %s77
      %p84 = scmp.eq.s32.totalorder %s25, 1
      %p85 = por %p83, %p84
      %p86 = scmp.ne.s32.totalorder %s77, %s78
      %p87 = scmp.eq.s32.totalorder %s25, 0
      %p88 = por %p86, %p87
      %p89 = scmp.ne.s32.totalorder %s77, %s78
      %p90 = scmp.eq.s32.totalorder %s26, 1
      %p91 = por %p89, %p90
      %p93 = scmp.ne.s32.totalorder %s78, %s92
      %p94 = scmp.eq.s32.totalorder %s26, 0
      %p95 = por %p93, %p94
      %s97 = sadd.s32 %s96, 1
      %p100 = scmp.eq.s32.totalorder %s20, 1
      %p101 = scmp.ne.s32.totalorder %s96, %s98
      %p102 = scmp.eq.s32.totalorder %s20, 0
      %p103 = por %p101, %p102
      %p104 = scmp.ne.s32.totalorder %s96, %s98
      %p105 = scmp.eq.s32.totalorder %s25, 1
      %p106 = por %p104, %p105
      %p107 = scmp.ne.s32.totalorder %s98, %s99
      %p108 = scmp.eq.s32.totalorder %s25, 0
      %p109 = por %p107, %p108
      %p110 = scmp.ne.s32.totalorder %s98, %s99
      %p111 = scmp.eq.s32.totalorder %s26, 1
      %p112 = por %p110, %p111
      %p114 = scmp.ne.s32.totalorder %s99, %s113
      %p115 = scmp.eq.s32.totalorder %s26, 0
      %p116 = por %p114, %p115
      %s118 = sadd.s32 %s117, 1
      %p121 = scmp.eq.s32.totalorder %s20, 1
      %p122 = scmp.ne.s32.totalorder %s117, %s119
      %p123 = scmp.eq.s32.totalorder %s20, 0
      %p124 = por %p122, %p123
      %p125 = scmp.ne.s32.totalorder %s117, %s119
      %p126 = scmp.eq.s32.totalorder %s25, 1
      %p127 = por %p125, %p126
      %p128 = scmp.ne.s32.totalorder %s119, %s120
      %p129 = scmp.eq.s32.totalorder %s25, 0
      %p130 = por %p128, %p129
      %p131 = scmp.ne.s32.totalorder %s119, %s120
      %p132 = scmp.eq.s32.totalorder %s26, 1
      %p133 = por %p131, %p132
      %p135 = scmp.ne.s32.totalorder %s120, %s134
      %p136 = scmp.eq.s32.totalorder %s26, 0
      %p137 = por %p135, %p136
      %s139 = sadd.s32 %s138, 1
      %p142 = scmp.eq.s32.totalorder %s20, 1
      %p143 = scmp.ne.s32.totalorder %s138, %s140
      %p144 = scmp.eq.s32.totalorder %s20, 0
      %p145 = por %p143, %p144
      %p146 = scmp.ne.s32.totalorder %s138, %s140
      %p147 = scmp.eq.s32.totalorder %s25, 1
      %p148 = por %p146, %p147
      %p149 = scmp.ne.s32.totalorder %s140, %s141
      %p150 = scmp.eq.s32.totalorder %s25, 0
      %p151 = por %p149, %p150
      %p152 = scmp.ne.s32.totalorder %s140, %s141
      %p153 = scmp.eq.s32.totalorder %s26, 1
      %p154 = por %p152, %p153
      %p156 = scmp.ne.s32.totalorder %s141, %s155
      %p157 = scmp.eq.s32.totalorder %s26, 0
      %p158 = por %p156, %p157
      %s159 = ssub.s32 %s20, %s27
      %p160 = scmp.eq.s32.totalorder %s159, 0
      %s162 = sadd.s32 %s161, 1
      %s163 = scalar_select %p160, %s161, %s162
      %p166 = pneg %p160
      %p167 = scmp.eq.s32.totalorder %s20, 1
      %p168 = por %p166, %p167
      %p169 = scmp.ne.s32.totalorder %s161, %s164
      %p170 = scmp.eq.s32.totalorder %s20, 0
      %p171 = por %p169, %p170
      %p172 = scmp.ne.s32.totalorder %s161, %s164
      %p173 = scmp.eq.s32.totalorder %s25, 1
      %p174 = por %p172, %p173
      %p175 = scmp.ne.s32.totalorder %s164, %s165
      %p176 = scmp.eq.s32.totalorder %s25, 0
      %p177 = por %p175, %p176
      %p178 = scmp.ne.s32.totalorder %s164, %s165
      %p179 = scmp.eq.s32.totalorder %s26, 1
      %p180 = por %p178, %p179
      %p182 = scmp.ne.s32.totalorder %s165, %s181
      %p183 = scmp.eq.s32.totalorder %s26, 0
      %p184 = por %p182, %p183
      %p185 = scmp.le.s32.totalorder 1, %s20
      %p186 = scmp.lt.s32.totalorder %s20, 3
      %p187 = pnand %p185, %p186
      %p188 = pneg %p187
      // Predicated region
      $region9: #{tpu_custom_call.1} parent=5 // pred_check
        _
      $region10: #{tpu_custom_call.1} parent=5 // pred_check_branch
        %190 = sbr.rel (%p187) target = $region12
      $region11: #{tpu_custom_call.1} parent=5 // pred_region
        %s191 = ssub.s32 %s20, 1
        // Predicated region
        $region13: #{tpu_custom_call.1} parent=11 // pred_check
          %p192 = pneg %p67
        $region14: #{tpu_custom_call.1} parent=11 // pred_check_branch
          %194 = sbr.rel (%p192) target = $region16
        $region15: #{tpu_custom_call.1} parent=11 // pred_region
          %s196 = ssub.s32 14336, 14336
          %197 = vsyncadd [#allocation6], %s196
          %s198 = sshll.u32 [#allocation5], 4
          %s199 = int_to_ptr.vmem [resolvable:$true] %s198
          %204 = dma.hbm_to_vmem [thread:$0]  %s1, 14336, %s199, [#allocation6], 448, 448, 28
        $region16: #{tpu_custom_call.1} parent=11 // pred_fallthru
          _
        // Predicated region
        $region17: #{tpu_custom_call.1} parent=11 // pred_check
          %p205 = pneg %p88
        $region18: #{tpu_custom_call.1} parent=11 // pred_check_branch
          %207 = sbr.rel (%p205) target = $region20
        $region19: #{tpu_custom_call.1} parent=11 // pred_region
          %s209 = ssub.s32 384, 384
          %210 = vsyncadd [#allocation6], %s209
          %s212 = sshll.u32 [#allocation7], 4
          %s213 = int_to_ptr.vmem [resolvable:$true] %s212
          %215 = dma.hbm_to_vmem [thread:$0]  %s2, 384, %s213, [#allocation6]
        $region20: #{tpu_custom_call.1} parent=11 // pred_fallthru
          _
        // Predicated region
        $region21: #{tpu_custom_call.1} parent=11 // pred_check
          %p216 = pneg %p109
        $region22: #{tpu_custom_call.1} parent=11 // pred_check_branch
          %218 = sbr.rel (%p216) target = $region24
        $region23: #{tpu_custom_call.1} parent=11 // pred_region
          %s220 = ssub.s32 384, 384
          %221 = vsyncadd [#allocation9], %s220
          %s223 = sshll.u32 [#allocation8], 4
          %s224 = int_to_ptr.vmem [resolvable:$true] %s223
          %226 = dma.hbm_to_vmem [thread:$0]  %s3, 384, %s224, [#allocation9]
        $region24: #{tpu_custom_call.1} parent=11 // pred_fallthru
          _
        // Predicated region
        $region25: #{tpu_custom_call.1} parent=11 // pred_check
          %p227 = pneg %p130
        $region26: #{tpu_custom_call.1} parent=11 // pred_check_branch
          %229 = sbr.rel (%p227) target = $region28
        $region27: #{tpu_custom_call.1} parent=11 // pred_region
          %s231 = ssub.s32 4096, 4096
          %232 = vsyncadd [#allocation9], %s231
          %s233 = sshll.u32 [#allocation10], 4
          %s234 = int_to_ptr.vmem [resolvable:$true] %s233
          %239 = dma.hbm_to_vmem [thread:$0]  %s4, 4096, %s234, [#allocation9], 128, 128, 8
        $region28: #{tpu_custom_call.1} parent=11 // pred_fallthru
          _
        // Predicated region
        $region29: #{tpu_custom_call.1} parent=11 // pred_check
          %p240 = pneg %p151
        $region30: #{tpu_custom_call.1} parent=11 // pred_check_branch
          %242 = sbr.rel (%p240) target = $region32
        $region31: #{tpu_custom_call.1} parent=11 // pred_region
          _
        $region32: #{tpu_custom_call.1} parent=11 // pred_fallthru
          _
      $region12: #{tpu_custom_call.1} parent=5 // pred_fallthru
        _
      %p243 = scmp.lt.s32.totalorder %s20, 2
      // Predicated region
      $region33: #{tpu_custom_call.1} parent=5 // pred_check
        %p244 = pneg %p243
      $region34: #{tpu_custom_call.1} parent=5 // pred_check_branch
        %246 = sbr.rel (%p244) target = $region36
      $region35: #{tpu_custom_call.1} parent=5 // pred_region
        // Predicated region
        $region37: #{tpu_custom_call.1} parent=35 // pred_check
          %p247 = pneg %p40
        $region38: #{tpu_custom_call.1} parent=35 // pred_check_branch
          %249 = sbr.rel (%p247) target = $region40
        $region39: #{tpu_custom_call.1} parent=35 // pred_region
          %s250 = sand.u32 %s30, 1
          %s251 = scalar_lea.sflag [#allocation3], %s250
          %s252 = sand.u32 %s30, 1
          %s253 = smul.addr %s252, 8
          %s254 = scalar_lea.vmem [#allocation2], %s253
          %s256 = ssub.s32 128, 128
          %257 = vsyncadd %s251, %s256
          %s258 = smul.addr %s20, 2
          %s259 = smul.addr %s258, 64
          %s260 = scalar_lea.hbm %s0, %s259
          %s262 = sshll.u32 %s254, 4
          %s263 = int_to_ptr.vmem [resolvable:$true] %s262
          %265 = dma.hbm_to_vmem [thread:$0]  %s260, 128, %s263, %s251
        $region40: #{tpu_custom_call.1} parent=35 // pred_fallthru
          _
      $region36: #{tpu_custom_call.1} parent=5 // pred_fallthru
        _
      %p266 = scmp.le.s32.totalorder 1, %s20
      %p267 = scmp.lt.s32.totalorder %s20, 3
      %p268 = pnand %p266, %p267
      %p269 = pneg %p268
      // Predicated region
      $region41: #{tpu_custom_call.1} parent=5 // pred_check
        _
      $region42: #{tpu_custom_call.1} parent=5 // pred_check_branch
        %271 = sbr.rel (%p268) target = $region44
      $region43: #{tpu_custom_call.1} parent=5 // pred_region
        %s272 = ssub.s32 %s20, 1
        %s273 = sand.u32 %s33, 1
        %s274 = scalar_lea.sflag [#allocation3], %s273
        %s275 = sand.u32 %s33, 1
        %s276 = smul.addr %s275, 8
        %s277 = scalar_lea.vmem [#allocation2], %s276
        // Predicated region
        $region45: #{tpu_custom_call.1} parent=43 // pred_check
          %p278 = pneg %p46
        $region46: #{tpu_custom_call.1} parent=43 // pred_check_branch
          %280 = sbr.rel (%p278) target = $region48
        $region47: #{tpu_custom_call.1} parent=43 // pred_region
          %281 = dma.done %s274, 128
        $region48: #{tpu_custom_call.1} parent=43 // pred_fallthru
          _
        // Predicated region
        $region49: #{tpu_custom_call.1} parent=43 // pred_check
          %p282 = pneg %p67
        $region50: #{tpu_custom_call.1} parent=43 // pred_check_branch
          %284 = sbr.rel (%p282) target = $region52
        $region51: #{tpu_custom_call.1} parent=43 // pred_region
          %285 = dma.done [#allocation6], 14336
        $region52: #{tpu_custom_call.1} parent=43 // pred_fallthru
          _
        // Predicated region
        $region53: #{tpu_custom_call.1} parent=43 // pred_check
          %p286 = pneg %p88
        $region54: #{tpu_custom_call.1} parent=43 // pred_check_branch
          %288 = sbr.rel (%p286) target = $region56
        $region55: #{tpu_custom_call.1} parent=43 // pred_region
          %289 = dma.done [#allocation6], 384
        $region56: #{tpu_custom_call.1} parent=43 // pred_fallthru
          _
        // Predicated region
        $region57: #{tpu_custom_call.1} parent=43 // pred_check
          %p290 = pneg %p109
        $region58: #{tpu_custom_call.1} parent=43 // pred_check_branch
          %292 = sbr.rel (%p290) target = $region60
        $region59: #{tpu_custom_call.1} parent=43 // pred_region
          %293 = dma.done [#allocation9], 384
        $region60: #{tpu_custom_call.1} parent=43 // pred_fallthru
          _
        // Predicated region
        $region61: #{tpu_custom_call.1} parent=43 // pred_check
          %p294 = pneg %p130
        $region62: #{tpu_custom_call.1} parent=43 // pred_check_branch
          %296 = sbr.rel (%p294) target = $region64
        $region63: #{tpu_custom_call.1} parent=43 // pred_region
          %297 = dma.done [#allocation9], 4096
        $region64: #{tpu_custom_call.1} parent=43 // pred_fallthru
          _
        %s298 = sand.u32 %s33, 1
        %s299 = scalar_lea.sflag [#allocation3], %s298
        %s300 = sand.u32 %s33, 1
        %s301 = smul.addr %s300, 8
        %s302 = scalar_lea.vmem [#allocation2], %s301
        %p303 = pneg %p46
        %p304 = pneg %p43
        %p305 = pneg %p67
        %p306 = pneg %p64
        %p307 = pneg %p88
        %p308 = pneg %p85
        %p309 = pneg %p109
        %p310 = pneg %p106
        %p311 = pneg %p130
        %p312 = pneg %p127
        %p313 = pneg %p151
        %p314 = pneg %p148
        %p315 = pneg %p177
        %p316 = pneg %p174
        %s317 = sand.u32 %s164, 1
        %s318 = scalar_lea.sflag [#allocation4], %s317
        %s319 = sand.u32 %s164, 1
        %s320 = smul.addr %s319, 16
        %s321 = scalar_lea.vmem [#allocation11], %s320
        %v323 = vld [vmem:[%s277] sm:$0xff]
        %v324 = vld [vmem:[#allocation5] sm:$0xff]
        %v325 = vld [vmem:[#allocation5 + $0x8] sm:$0xff]
        %v326 = vld [vmem:[#allocation5 + $0x10] sm:$0xff]
        %v327 = vld [vmem:[#allocation5 + $0x18] sm:$0xf]
        %v328 = vld [vmem:[#allocation5 + $0x1c] sm:$0xff]
        %v329 = vld [vmem:[#allocation5 + $0x24] sm:$0xff]
        %v330 = vld [vmem:[#allocation5 + $0x2c] sm:$0xff]
        %v331 = vld [vmem:[#allocation5 + $0x34] sm:$0xf]
        %v332 = vld [vmem:[#allocation5 + $0x38] sm:$0xff]
        %v333 = vld [vmem:[#allocation5 + $0x40] sm:$0xff]
        %v334 = vld [vmem:[#allocation5 + $0x48] sm:$0xff]
        %v335 = vld [vmem:[#allocation5 + $0x50] sm:$0xf]
        %v336 = vld [vmem:[#allocation5 + $0x54] sm:$0xff]
        %v337 = vld [vmem:[#allocation5 + $0x5c] sm:$0xff]
        %v338 = vld [vmem:[#allocation5 + $0x64] sm:$0xff]
        %v339 = vld [vmem:[#allocation5 + $0x6c] sm:$0xf]
        %v340 = vld [vmem:[#allocation5 + $0x70] sm:$0xff]
        %v341 = vld [vmem:[#allocation5 + $0x78] sm:$0xff]
        %v342 = vld [vmem:[#allocation5 + $0x80] sm:$0xff]
        %v343 = vld [vmem:[#allocation5 + $0x88] sm:$0xf]
        %v344 = vld [vmem:[#allocation5 + $0x8c] sm:$0xff]
        %v345 = vld [vmem:[#allocation5 + $0x94] sm:$0xff]
        %v346 = vld [vmem:[#allocation5 + $0x9c] sm:$0xff]
        %v347 = vld [vmem:[#allocation5 + $0xa4] sm:$0xf]
        %v348 = vld [vmem:[#allocation5 + $0xa8] sm:$0xff]
        %v349 = vld [vmem:[#allocation5 + $0xb0] sm:$0xff]
        %v350 = vld [vmem:[#allocation5 + $0xb8] sm:$0xff]
        %v351 = vld [vmem:[#allocation5 + $0xc0] sm:$0xf]
        %v352 = vld [vmem:[#allocation5 + $0xc4] sm:$0xff]
        %v353 = vld [vmem:[#allocation5 + $0xcc] sm:$0xff]
        %v354 = vld [vmem:[#allocation5 + $0xd4] sm:$0xff]
        %v355 = vld [vmem:[#allocation5 + $0xdc] sm:$0xf]
        %v356 = vld [vmem:[#allocation5 + $0xe0] sm:$0xff]
        %v357 = vld [vmem:[#allocation5 + $0xe8] sm:$0xff]
        %v358 = vld [vmem:[#allocation5 + $0xf0] sm:$0xff]
        %v359 = vld [vmem:[#allocation5 + $0xf8] sm:$0xf]
        %v360 = vld [vmem:[#allocation5 + $0xfc] sm:$0xff]
        %v361 = vld [vmem:[#allocation5 + $0x104] sm:$0xff]
        %v362 = vld [vmem:[#allocation5 + $0x10c] sm:$0xff]
        %v363 = vld [vmem:[#allocation5 + $0x114] sm:$0xf]
        %v364 = vld [vmem:[#allocation5 + $0x118] sm:$0xff]
        %v365 = vld [vmem:[#allocation5 + $0x120] sm:$0xff]
        %v366 = vld [vmem:[#allocation5 + $0x128] sm:$0xff]
        %v367 = vld [vmem:[#allocation5 + $0x130] sm:$0xf]
        %v368 = vld [vmem:[#allocation5 + $0x134] sm:$0xff]
        %v369 = vld [vmem:[#allocation5 + $0x13c] sm:$0xff]
        %v370 = vld [vmem:[#allocation5 + $0x144] sm:$0xff]
        %v371 = vld [vmem:[#allocation5 + $0x14c] sm:$0xf]
        %v372 = vld [vmem:[#allocation5 + $0x150] sm:$0xff]
        %v373 = vld [vmem:[#allocation5 + $0x158] sm:$0xff]
        %v374 = vld [vmem:[#allocation5 + $0x160] sm:$0xff]
        %v375 = vld [vmem:[#allocation5 + $0x168] sm:$0xf]
        %v376 = vld [vmem:[#allocation5 + $0x16c] sm:$0xff]
        %v377 = vld [vmem:[#allocation5 + $0x174] sm:$0xff]
        %v378 = vld [vmem:[#allocation5 + $0x17c] sm:$0xff]
        %v379 = vld [vmem:[#allocation5 + $0x184] sm:$0xf]
        %v380 = vld [vmem:[#allocation5 + $0x188] sm:$0xff]
        %v381 = vld [vmem:[#allocation5 + $0x190] sm:$0xff]
        %v382 = vld [vmem:[#allocation5 + $0x198] sm:$0xff]
        %v383 = vld [vmem:[#allocation5 + $0x1a0] sm:$0xf]
        %v384 = vld [vmem:[#allocation5 + $0x1a4] sm:$0xff]
        %v385 = vld [vmem:[#allocation5 + $0x1ac] sm:$0xff]
        %v386 = vld [vmem:[#allocation5 + $0x1b4] sm:$0xff]
        %v387 = vld [vmem:[#allocation5 + $0x1bc] sm:$0xf]
        %v388 = vld [vmem:[#allocation5 + $0x1c0] sm:$0xff]
        %v389 = vld [vmem:[#allocation5 + $0x1c8] sm:$0xff]
        %v390 = vld [vmem:[#allocation5 + $0x1d0] sm:$0xff]
        %v391 = vld [vmem:[#allocation5 + $0x1d8] sm:$0xf]
        %v392 = vld [vmem:[#allocation5 + $0x1dc] sm:$0xff]
        %v393 = vld [vmem:[#allocation5 + $0x1e4] sm:$0xff]
        %v394 = vld [vmem:[#allocation5 + $0x1ec] sm:$0xff]
        %v395 = vld [vmem:[#allocation5 + $0x1f4] sm:$0xf]
        %v396 = vld [vmem:[#allocation5 + $0x1f8] sm:$0xff]
        %v397 = vld [vmem:[#allocation5 + $0x200] sm:$0xff]
        %v398 = vld [vmem:[#allocation5 + $0x208] sm:$0xff]
        %v399 = vld [vmem:[#allocation5 + $0x210] sm:$0xf]
        %v400 = vld [vmem:[#allocation5 + $0x214] sm:$0xff]
        %v401 = vld [vmem:[#allocation5 + $0x21c] sm:$0xff]
        %v402 = vld [vmem:[#allocation5 + $0x224] sm:$0xff]
        %v403 = vld [vmem:[#allocation5 + $0x22c] sm:$0xf]
        %v404 = vld [vmem:[#allocation5 + $0x230] sm:$0xff]
        %v405 = vld [vmem:[#allocation5 + $0x238] sm:$0xff]
        %v406 = vld [vmem:[#allocation5 + $0x240] sm:$0xff]
        %v407 = vld [vmem:[#allocation5 + $0x248] sm:$0xf]
        %v408 = vld [vmem:[#allocation5 + $0x24c] sm:$0xff]
        %v409 = vld [vmem:[#allocation5 + $0x254] sm:$0xff]
        %v410 = vld [vmem:[#allocation5 + $0x25c] sm:$0xff]
        %v411 = vld [vmem:[#allocation5 + $0x264] sm:$0xf]
        %v412 = vld [vmem:[#allocation5 + $0x268] sm:$0xff]
        %v413 = vld [vmem:[#allocation5 + $0x270] sm:$0xff]
        %v414 = vld [vmem:[#allocation5 + $0x278] sm:$0xff]
        %v415 = vld [vmem:[#allocation5 + $0x280] sm:$0xf]
        %v416 = vld [vmem:[#allocation5 + $0x284] sm:$0xff]
        %v417 = vld [vmem:[#allocation5 + $0x28c] sm:$0xff]
        %v418 = vld [vmem:[#allocation5 + $0x294] sm:$0xff]
        %v419 = vld [vmem:[#allocation5 + $0x29c] sm:$0xf]
        %v420 = vld [vmem:[#allocation5 + $0x2a0] sm:$0xff]
        %v421 = vld [vmem:[#allocation5 + $0x2a8] sm:$0xff]
        %v422 = vld [vmem:[#allocation5 + $0x2b0] sm:$0xff]
        %v423 = vld [vmem:[#allocation5 + $0x2b8] sm:$0xf]
        %v424 = vld [vmem:[#allocation5 + $0x2bc] sm:$0xff]
        %v425 = vld [vmem:[#allocation5 + $0x2c4] sm:$0xff]
        %v426 = vld [vmem:[#allocation5 + $0x2cc] sm:$0xff]
        %v427 = vld [vmem:[#allocation5 + $0x2d4] sm:$0xf]
        %v428 = vld [vmem:[#allocation5 + $0x2d8] sm:$0xff]
        %v429 = vld [vmem:[#allocation5 + $0x2e0] sm:$0xff]
        %v430 = vld [vmem:[#allocation5 + $0x2e8] sm:$0xff]
        %v431 = vld [vmem:[#allocation5 + $0x2f0] sm:$0xf]
        %v432 = vld [vmem:[#allocation5 + $0x2f4] sm:$0xff]
        %v433 = vld [vmem:[#allocation5 + $0x2fc] sm:$0xff]
        %v434 = vld [vmem:[#allocation5 + $0x304] sm:$0xff]
        %v435 = vld [vmem:[#allocation5 + $0x30c] sm:$0xf]
        %v436 = vld [vmem:[#allocation5 + $0x310] sm:$0xff]
        %v437 = vld [vmem:[#allocation5 + $0x318] sm:$0xff]
        %v438 = vld [vmem:[#allocation5 + $0x320] sm:$0xff]
        %v439 = vld [vmem:[#allocation5 + $0x328] sm:$0xf]
        %v440 = vld [vmem:[#allocation5 + $0x32c] sm:$0xff]
        %v441 = vld [vmem:[#allocation5 + $0x334] sm:$0xff]
        %v442 = vld [vmem:[#allocation5 + $0x33c] sm:$0xff]
        %v443 = vld [vmem:[#allocation5 + $0x344] sm:$0xf]
        %v444 = vld [vmem:[#allocation5 + $0x348] sm:$0xff]
        %v445 = vld [vmem:[#allocation5 + $0x350] sm:$0xff]
        %v446 = vld [vmem:[#allocation5 + $0x358] sm:$0xff]
        %v447 = vld [vmem:[#allocation5 + $0x360] sm:$0xf]
        %v448 = vld [vmem:[#allocation5 + $0x364] sm:$0xff]
        %v449 = vld [vmem:[#allocation5 + $0x36c] sm:$0xff]
        %v450 = vld [vmem:[#allocation5 + $0x374] sm:$0xff]
        %v451 = vld [vmem:[#allocation5 + $0x37c] sm:$0xf]
        %v453 = vunpack.c.l.b16 %v323
        %v454 = vunpack.c.h.b16 %v323
        %v455 = vpack.c.b16 %v453, %v453
        %v456 = vpack.c.b16 %v454, %v454
        %v587 = vunpack.c.l.b16 %v324
        %v588 = vunpack.c.h.b16 %v324
        %v589 = vunpack.c.l.b16 %v325
        %v590 = vunpack.c.h.b16 %v325
        %v591 = vunpack.c.l.b16 %v326
        %v592 = vunpack.c.h.b16 %v326
        %v593 = vunpack.c.l.b16 %v327
        %v594 = vunpack.c.l.b16 %v328
        %v595 = vunpack.c.h.b16 %v328
        %v596 = vunpack.c.l.b16 %v329
        %v597 = vunpack.c.h.b16 %v329
        %v598 = vunpack.c.l.b16 %v330
        %v599 = vunpack.c.h.b16 %v330
        %v600 = vunpack.c.l.b16 %v331
        %v601 = vunpack.c.l.b16 %v332
        %v602 = vunpack.c.h.b16 %v332
        %v603 = vunpack.c.l.b16 %v333
        %v604 = vunpack.c.h.b16 %v333
        %v605 = vunpack.c.l.b16 %v334
        %v606 = vunpack.c.h.b16 %v334
        %v607 = vunpack.c.l.b16 %v335
        %v608 = vunpack.c.l.b16 %v336
        %v609 = vunpack.c.h.b16 %v336
        %v610 = vunpack.c.l.b16 %v337
        %v611 = vunpack.c.h.b16 %v337
        %v612 = vunpack.c.l.b16 %v338
        %v613 = vunpack.c.h.b16 %v338
        %v614 = vunpack.c.l.b16 %v339
        %v615 = vunpack.c.l.b16 %v340
        %v616 = vunpack.c.h.b16 %v340
        %v617 = vunpack.c.l.b16 %v341
        %v618 = vunpack.c.h.b16 %v341
        %v619 = vunpack.c.l.b16 %v342
        %v620 = vunpack.c.h.b16 %v342
        %v621 = vunpack.c.l.b16 %v343
        %v622 = vunpack.c.l.b16 %v344
        %v623 = vunpack.c.h.b16 %v344
        %v624 = vunpack.c.l.b16 %v345
        %v625 = vunpack.c.h.b16 %v345
        %v626 = vunpack.c.l.b16 %v346
        %v627 = vunpack.c.h.b16 %v346
        %v628 = vunpack.c.l.b16 %v347
        %v629 = vunpack.c.l.b16 %v348
        %v630 = vunpack.c.h.b16 %v348
        %v631 = vunpack.c.l.b16 %v349
        %v632 = vunpack.c.h.b16 %v349
        %v633 = vunpack.c.l.b16 %v350
        %v634 = vunpack.c.h.b16 %v350
        %v635 = vunpack.c.l.b16 %v351
        %v636 = vunpack.c.l.b16 %v352
        %v637 = vunpack.c.h.b16 %v352
        %v638 = vunpack.c.l.b16 %v353
        %v639 = vunpack.c.h.b16 %v353
        %v640 = vunpack.c.l.b16 %v354
        %v641 = vunpack.c.h.b16 %v354
        %v642 = vunpack.c.l.b16 %v355
        %v643 = vunpack.c.l.b16 %v356
        %v644 = vunpack.c.h.b16 %v356
        %v645 = vunpack.c.l.b16 %v357
        %v646 = vunpack.c.h.b16 %v357
        %v647 = vunpack.c.l.b16 %v358
        %v648 = vunpack.c.h.b16 %v358
        %v649 = vunpack.c.l.b16 %v359
        %v650 = vunpack.c.l.b16 %v360
        %v651 = vunpack.c.h.b16 %v360
        %v652 = vunpack.c.l.b16 %v361
        %v653 = vunpack.c.h.b16 %v361
        %v654 = vunpack.c.l.b16 %v362
        %v655 = vunpack.c.h.b16 %v362
        %v656 = vunpack.c.l.b16 %v363
        %v657 = vunpack.c.l.b16 %v364
        %v658 = vunpack.c.h.b16 %v364
        %v659 = vunpack.c.l.b16 %v365
        %v660 = vunpack.c.h.b16 %v365
        %v661 = vunpack.c.l.b16 %v366
        %v662 = vunpack.c.h.b16 %v366
        %v663 = vunpack.c.l.b16 %v367
        %v664 = vunpack.c.l.b16 %v368
        %v665 = vunpack.c.h.b16 %v368
        %v666 = vunpack.c.l.b16 %v369
        %v667 = vunpack.c.h.b16 %v369
        %v668 = vunpack.c.l.b16 %v370
        %v669 = vunpack.c.h.b16 %v370
        %v670 = vunpack.c.l.b16 %v371
        %v671 = vunpack.c.l.b16 %v372
        %v672 = vunpack.c.h.b16 %v372
        %v673 = vunpack.c.l.b16 %v373
        %v674 = vunpack.c.h.b16 %v373
        %v675 = vunpack.c.l.b16 %v374
        %v676 = vunpack.c.h.b16 %v374
        %v677 = vunpack.c.l.b16 %v375
        %v678 = vunpack.c.l.b16 %v376
        %v679 = vunpack.c.h.b16 %v376
        %v680 = vunpack.c.l.b16 %v377
        %v681 = vunpack.c.h.b16 %v377
        %v682 = vunpack.c.l.b16 %v378
        %v683 = vunpack.c.h.b16 %v378
        %v684 = vunpack.c.l.b16 %v379
        %v685 = vunpack.c.l.b16 %v380
        %v686 = vunpack.c.h.b16 %v380
        %v687 = vunpack.c.l.b16 %v381
        %v688 = vunpack.c.h.b16 %v381
        %v689 = vunpack.c.l.b16 %v382
        %v690 = vunpack.c.h.b16 %v382
        %v691 = vunpack.c.l.b16 %v383
        %v692 = vunpack.c.l.b16 %v384
        %v693 = vunpack.c.h.b16 %v384
        %v694 = vunpack.c.l.b16 %v385
        %v695 = vunpack.c.h.b16 %v385
        %v696 = vunpack.c.l.b16 %v386
        %v697 = vunpack.c.h.b16 %v386
        %v698 = vunpack.c.l.b16 %v387
        %v699 = vunpack.c.l.b16 %v388
        %v700 = vunpack.c.h.b16 %v388
        %v701 = vunpack.c.l.b16 %v389
        %v702 = vunpack.c.h.b16 %v389
        %v703 = vunpack.c.l.b16 %v390
        %v704 = vunpack.c.h.b16 %v390
        %v705 = vunpack.c.l.b16 %v391
        %v706 = vunpack.c.l.b16 %v392
        %v707 = vunpack.c.h.b16 %v392
        %v708 = vunpack.c.l.b16 %v393
        %v709 = vunpack.c.h.b16 %v393
        %v710 = vunpack.c.l.b16 %v394
        %v711 = vunpack.c.h.b16 %v394
        %v712 = vunpack.c.l.b16 %v395
        %v713 = vunpack.c.l.b16 %v396
        %v714 = vunpack.c.h.b16 %v396
        %v715 = vunpack.c.l.b16 %v397
        %v716 = vunpack.c.h.b16 %v397
        %v717 = vunpack.c.l.b16 %v398
        %v718 = vunpack.c.h.b16 %v398
        %v719 = vunpack.c.l.b16 %v399
        %v720 = vunpack.c.l.b16 %v400
        %v721 = vunpack.c.h.b16 %v400
        %v722 = vunpack.c.l.b16 %v401
        %v723 = vunpack.c.h.b16 %v401
        %v724 = vunpack.c.l.b16 %v402
        %v725 = vunpack.c.h.b16 %v402
        %v726 = vunpack.c.l.b16 %v403
        %v727 = vunpack.c.l.b16 %v404
        %v728 = vunpack.c.h.b16 %v404
        %v729 = vunpack.c.l.b16 %v405
        %v730 = vunpack.c.h.b16 %v405
        %v731 = vunpack.c.l.b16 %v406
        %v732 = vunpack.c.h.b16 %v406
        %v733 = vunpack.c.l.b16 %v407
        %v734 = vunpack.c.l.b16 %v408
        %v735 = vunpack.c.h.b16 %v408
        %v736 = vunpack.c.l.b16 %v409
        %v737 = vunpack.c.h.b16 %v409
        %v738 = vunpack.c.l.b16 %v410
        %v739 = vunpack.c.h.b16 %v410
        %v740 = vunpack.c.l.b16 %v411
        %v741 = vunpack.c.l.b16 %v412
        %v742 = vunpack.c.h.b16 %v412
        %v743 = vunpack.c.l.b16 %v413
        %v744 = vunpack.c.h.b16 %v413
        %v745 = vunpack.c.l.b16 %v414
        %v746 = vunpack.c.h.b16 %v414
        %v747 = vunpack.c.l.b16 %v415
        %v748 = vunpack.c.l.b16 %v416
        %v749 = vunpack.c.h.b16 %v416
        %v750 = vunpack.c.l.b16 %v417
        %v751 = vunpack.c.h.b16 %v417
        %v752 = vunpack.c.l.b16 %v418
        %v753 = vunpack.c.h.b16 %v418
        %v754 = vunpack.c.l.b16 %v419
        %v755 = vunpack.c.l.b16 %v420
        %v756 = vunpack.c.h.b16 %v420
        %v757 = vunpack.c.l.b16 %v421
        %v758 = vunpack.c.h.b16 %v421
        %v759 = vunpack.c.l.b16 %v422
        %v760 = vunpack.c.h.b16 %v422
        %v761 = vunpack.c.l.b16 %v423
        %v762 = vunpack.c.l.b16 %v424
        %v763 = vunpack.c.h.b16 %v424
        %v764 = vunpack.c.l.b16 %v425
        %v765 = vunpack.c.h.b16 %v425
        %v766 = vunpack.c.l.b16 %v426
        %v767 = vunpack.c.h.b16 %v426
        %v768 = vunpack.c.l.b16 %v427
        %v769 = vunpack.c.l.b16 %v428
        %v770 = vunpack.c.h.b16 %v428
        %v771 = vunpack.c.l.b16 %v429
        %v772 = vunpack.c.h.b16 %v429
        %v773 = vunpack.c.l.b16 %v430
        %v774 = vunpack.c.h.b16 %v430
        %v775 = vunpack.c.l.b16 %v431
        %v776 = vunpack.c.l.b16 %v432
        %v777 = vunpack.c.h.b16 %v432
        %v778 = vunpack.c.l.b16 %v433
        %v779 = vunpack.c.h.b16 %v433
        %v780 = vunpack.c.l.b16 %v434
        %v781 = vunpack.c.h.b16 %v434
        %v782 = vunpack.c.l.b16 %v435
        %v783 = vunpack.c.l.b16 %v436
        %v784 = vunpack.c.h.b16 %v436
        %v785 = vunpack.c.l.b16 %v437
        %v786 = vunpack.c.h.b16 %v437
        %v787 = vunpack.c.l.b16 %v438
        %v788 = vunpack.c.h.b16 %v438
        %v789 = vunpack.c.l.b16 %v439
        %v790 = vunpack.c.l.b16 %v440
        %v791 = vunpack.c.h.b16 %v440
        %v792 = vunpack.c.l.b16 %v441
        %v793 = vunpack.c.h.b16 %v441
        %v794 = vunpack.c.l.b16 %v442
        %v795 = vunpack.c.h.b16 %v442
        %v796 = vunpack.c.l.b16 %v443
        %v797 = vunpack.c.l.b16 %v444
        %v798 = vunpack.c.h.b16 %v444
        %v799 = vunpack.c.l.b16 %v445
        %v800 = vunpack.c.h.b16 %v445
        %v801 = vunpack.c.l.b16 %v446
        %v802 = vunpack.c.h.b16 %v446
        %v803 = vunpack.c.l.b16 %v447
        %v804 = vunpack.c.l.b16 %v448
        %v805 = vunpack.c.h.b16 %v448
        %v806 = vunpack.c.l.b16 %v449
        %v807 = vunpack.c.h.b16 %v449
        %v808 = vunpack.c.l.b16 %v450
        %v809 = vunpack.c.h.b16 %v450
        %v810 = vunpack.c.l.b16 %v451
        %v811 = vpack.c.b16 %v594, %v587
        %v812 = vpack.c.b16 %v595, %v588
        %v813 = vpack.c.b16 %v596, %v589
        %v814 = vpack.c.b16 %v597, %v590
        %v815 = vpack.c.b16 %v598, %v591
        %v816 = vpack.c.b16 %v599, %v592
        %v817 = vpack.c.b16 %v600, %v593
        %v818 = vpack.c.b16 %v608, %v601
        %v819 = vpack.c.b16 %v609, %v602
        %v820 = vpack.c.b16 %v610, %v603
        %v821 = vpack.c.b16 %v611, %v604
        %v822 = vpack.c.b16 %v612, %v605
        %v823 = vpack.c.b16 %v613, %v606
        %v824 = vpack.c.b16 %v614, %v607
        %v825 = vpack.c.b16 %v622, %v615
        %v826 = vpack.c.b16 %v623, %v616
        %v827 = vpack.c.b16 %v624, %v617
        %v828 = vpack.c.b16 %v625, %v618
        %v829 = vpack.c.b16 %v626, %v619
        %v830 = vpack.c.b16 %v627, %v620
        %v831 = vpack.c.b16 %v628, %v621
        %v832 = vpack.c.b16 %v636, %v629
        %v833 = vpack.c.b16 %v637, %v630
        %v834 = vpack.c.b16 %v638, %v631
        %v835 = vpack.c.b16 %v639, %v632
        %v836 = vpack.c.b16 %v640, %v633
        %v837 = vpack.c.b16 %v641, %v634
        %v838 = vpack.c.b16 %v642, %v635
        %v839 = vpack.c.b16 %v650, %v643
        %v840 = vpack.c.b16 %v651, %v644
        %v841 = vpack.c.b16 %v652, %v645
        %v842 = vpack.c.b16 %v653, %v646
        %v843 = vpack.c.b16 %v654, %v647
        %v844 = vpack.c.b16 %v655, %v648
        %v845 = vpack.c.b16 %v656, %v649
        %v846 = vpack.c.b16 %v664, %v657
        %v847 = vpack.c.b16 %v665, %v658
        %v848 = vpack.c.b16 %v666, %v659
        %v849 = vpack.c.b16 %v667, %v660
        %v850 = vpack.c.b16 %v668, %v661
        %v851 = vpack.c.b16 %v669, %v662
        %v852 = vpack.c.b16 %v670, %v663
        %v853 = vpack.c.b16 %v678, %v671
        %v854 = vpack.c.b16 %v679, %v672
        %v855 = vpack.c.b16 %v680, %v673
        %v856 = vpack.c.b16 %v681, %v674
        %v857 = vpack.c.b16 %v682, %v675
        %v858 = vpack.c.b16 %v683, %v676
        %v859 = vpack.c.b16 %v684, %v677
        %v860 = vpack.c.b16 %v692, %v685
        %v861 = vpack.c.b16 %v693, %v686
        %v862 = vpack.c.b16 %v694, %v687
        %v863 = vpack.c.b16 %v695, %v688
        %v864 = vpack.c.b16 %v696, %v689
        %v865 = vpack.c.b16 %v697, %v690
        %v866 = vpack.c.b16 %v698, %v691
        %v867 = vpack.c.b16 %v706, %v699
        %v868 = vpack.c.b16 %v707, %v700
        %v869 = vpack.c.b16 %v708, %v701
        %v870 = vpack.c.b16 %v709, %v702
        %v871 = vpack.c.b16 %v710, %v703
        %v872 = vpack.c.b16 %v711, %v704
        %v873 = vpack.c.b16 %v712, %v705
        %v874 = vpack.c.b16 %v720, %v713
        %v875 = vpack.c.b16 %v721, %v714
        %v876 = vpack.c.b16 %v722, %v715
        %v877 = vpack.c.b16 %v723, %v716
        %v878 = vpack.c.b16 %v724, %v717
        %v879 = vpack.c.b16 %v725, %v718
        %v880 = vpack.c.b16 %v726, %v719
        %v881 = vpack.c.b16 %v734, %v727
        %v882 = vpack.c.b16 %v735, %v728
        %v883 = vpack.c.b16 %v736, %v729
        %v884 = vpack.c.b16 %v737, %v730
        %v885 = vpack.c.b16 %v738, %v731
        %v886 = vpack.c.b16 %v739, %v732
        %v887 = vpack.c.b16 %v740, %v733
        %v888 = vpack.c.b16 %v748, %v741
        %v889 = vpack.c.b16 %v749, %v742
        %v890 = vpack.c.b16 %v750, %v743
        %v891 = vpack.c.b16 %v751, %v744
        %v892 = vpack.c.b16 %v752, %v745
        %v893 = vpack.c.b16 %v753, %v746
        %v894 = vpack.c.b16 %v754, %v747
        %v895 = vpack.c.b16 %v762, %v755
        %v896 = vpack.c.b16 %v763, %v756
        %v897 = vpack.c.b16 %v764, %v757
        %v898 = vpack.c.b16 %v765, %v758
        %v899 = vpack.c.b16 %v766, %v759
        %v900 = vpack.c.b16 %v767, %v760
        %v901 = vpack.c.b16 %v768, %v761
        %v902 = vpack.c.b16 %v776, %v769
        %v903 = vpack.c.b16 %v777, %v770
        %v904 = vpack.c.b16 %v778, %v771
        %v905 = vpack.c.b16 %v779, %v772
        %v906 = vpack.c.b16 %v780, %v773
        %v907 = vpack.c.b16 %v781, %v774
        %v908 = vpack.c.b16 %v782, %v775
        %v909 = vpack.c.b16 %v790, %v783
        %v910 = vpack.c.b16 %v791, %v784
        %v911 = vpack.c.b16 %v792, %v785
        %v912 = vpack.c.b16 %v793, %v786
        %v913 = vpack.c.b16 %v794, %v787
        %v914 = vpack.c.b16 %v795, %v788
        %v915 = vpack.c.b16 %v796, %v789
        %v916 = vpack.c.b16 %v804, %v797
        %v917 = vpack.c.b16 %v805, %v798
        %v918 = vpack.c.b16 %v806, %v799
        %v919 = vpack.c.b16 %v807, %v800
        %v920 = vpack.c.b16 %v808, %v801
        %v921 = vpack.c.b16 %v809, %v802
        %v922 = vpack.c.b16 %v810, %v803
        %1035 = vmatprep.subr.bf16.mxu0 %v812
        %1036 = vmatpush1.bf16.msra.mxu0 %v811
        %1037 = vmatprep.subr.bf16.mxu0 %v819
        %1038 = vmatpush1.bf16.msra.mxu0 %v818
        %1039 = vmatprep.subr.bf16.mxu0 %v826
        %1040 = vmatpush1.bf16.msra.mxu0 %v825
        %1041 = vmatprep.subr.bf16.mxu0 %v833
        %1042 = vmatpush1.bf16.msra.mxu0 %v832
        %1043 = vmatprep.subr.bf16.mxu0 %v840
        %1044 = vmatpush1.bf16.msra.mxu0 %v839
        %1045 = vmatprep.subr.bf16.mxu0 %v847
        %1046 = vmatpush1.bf16.msra.mxu0 %v846
        %1047 = vmatprep.subr.bf16.mxu0 %v854
        %1048 = vmatpush1.bf16.msra.mxu0 %v853
        %1049 = vmatprep.subr.bf16.mxu0 %v861
        %1050 = vmatpush1.bf16.msra.mxu0 %v860
        %1051 = vmatprep.subr.bf16.mxu0 %v868
        %1052 = vmatpush1.bf16.msra.mxu0 %v867
        %1053 = vmatprep.subr.bf16.mxu0 %v875
        %1054 = vmatpush1.bf16.msra.mxu0 %v874
        %1055 = vmatprep.subr.bf16.mxu0 %v882
        %1056 = vmatpush1.bf16.msra.mxu0 %v881
        %1057 = vmatprep.subr.bf16.mxu0 %v889
        %1058 = vmatpush1.bf16.msra.mxu0 %v888
        %1059 = vmatprep.subr.bf16.mxu0 %v896
        %1060 = vmatpush1.bf16.msra.mxu0 %v895
        %1061 = vmatprep.subr.bf16.mxu0 %v903
        %1062 = vmatpush1.bf16.msra.mxu0 %v902
        %1063 = vmatprep.subr.bf16.mxu0 %v910
        %1064 = vmatpush1.bf16.msra.mxu0 %v909
        %1065 = vmatprep.subr.bf16.mxu0 %v917
        %1066 = vmatpush1.bf16.msra.mxu0 %v916
        %1067 = vmatprep.mubr.bf16.mxu0 %v456
        %1068 = vmatmul.mubr.bf16.gmra.mrb[0].mxu0 %v455
        %v1069 = vpop.f32.mrb[0].mxu0
        %v1070 = vadd.f32 0.0, %v1069
        %v1071 = vpop.f32.mrb[0].mxu0
        %v1072 = vadd.f32 0.0, %v1071
        %v1073 = vpop.f32.mrb[0].mxu0
        %v1074 = vpop.f32.mrb[0].mxu0
        %1075 = vdwg.mxu0
        %1076 = vmatprep.subr.bf16.mxu0 %v814
        %1077 = vmatpush1.bf16.msra.mxu0 %v813
        %1078 = vmatprep.subr.bf16.mxu0 %v821
        %1079 = vmatpush1.bf16.msra.mxu0 %v820
        %1080 = vmatprep.subr.bf16.mxu0 %v828
        %1081 = vmatpush1.bf16.msra.mxu0 %v827
        %1082 = vmatprep.subr.bf16.mxu0 %v835
        %1083 = vmatpush1.bf16.msra.mxu0 %v834
        %1084 = vmatprep.subr.bf16.mxu0 %v842
        %1085 = vmatpush1.bf16.msra.mxu0 %v841
        %1086 = vmatprep.subr.bf16.mxu0 %v849
        %1087 = vmatpush1.bf16.msra.mxu0 %v848
        %1088 = vmatprep.subr.bf16.mxu0 %v856
        %1089 = vmatpush1.bf16.msra.mxu0 %v855
        %1090 = vmatprep.subr.bf16.mxu0 %v863
        %1091 = vmatpush1.bf16.msra.mxu0 %v862
        %1092 = vmatprep.subr.bf16.mxu0 %v870
        %1093 = vmatpush1.bf16.msra.mxu0 %v869
        %1094 = vmatprep.subr.bf16.mxu0 %v877
        %1095 = vmatpush1.bf16.msra.mxu0 %v876
        %1096 = vmatprep.subr.bf16.mxu0 %v884
        %1097 = vmatpush1.bf16.msra.mxu0 %v883
        %1098 = vmatprep.subr.bf16.mxu0 %v891
        %1099 = vmatpush1.bf16.msra.mxu0 %v890
        %1100 = vmatprep.subr.bf16.mxu0 %v898
        %1101 = vmatpush1.bf16.msra.mxu0 %v897
        %1102 = vmatprep.subr.bf16.mxu0 %v905
        %1103 = vmatpush1.bf16.msra.mxu0 %v904
        %1104 = vmatprep.subr.bf16.mxu0 %v912
        %1105 = vmatpush1.bf16.msra.mxu0 %v911
        %1106 = vmatprep.subr.bf16.mxu0 %v919
        %1107 = vmatpush1.bf16.msra.mxu0 %v918
        %1108 = vmatprep.mubr.bf16.mxu0 %v456
        %1109 = vmatmul.mubr.bf16.gmra.mrb[0].mxu0 %v455
        %v1110 = vpop.f32.mrb[0].mxu0
        %v1111 = vadd.f32 0.0, %v1110
        %v1112 = vpop.f32.mrb[0].mxu0
        %v1113 = vadd.f32 0.0, %v1112
        %v1114 = vpop.f32.mrb[0].mxu0
        %v1115 = vpop.f32.mrb[0].mxu0
        %1116 = vdwg.mxu0
        %1117 = vmatprep.subr.bf16.mxu0 %v816
        %1118 = vmatpush1.bf16.msra.mxu0 %v815
        %1119 = vmatprep.subr.bf16.mxu0 %v823
        %1120 = vmatpush1.bf16.msra.mxu0 %v822
        %1121 = vmatprep.subr.bf16.mxu0 %v830
        %1122 = vmatpush1.bf16.msra.mxu0 %v829
        %1123 = vmatprep.subr.bf16.mxu0 %v837
        %1124 = vmatpush1.bf16.msra.mxu0 %v836
        %1125 = vmatprep.subr.bf16.mxu0 %v844
        %1126 = vmatpush1.bf16.msra.mxu0 %v843
        %1127 = vmatprep.subr.bf16.mxu0 %v851
        %1128 = vmatpush1.bf16.msra.mxu0 %v850
        %1129 = vmatprep.subr.bf16.mxu0 %v858
        %1130 = vmatpush1.bf16.msra.mxu0 %v857
        %1131 = vmatprep.subr.bf16.mxu0 %v865
        %1132 = vmatpush1.bf16.msra.mxu0 %v864
        %1133 = vmatprep.subr.bf16.mxu0 %v872
        %1134 = vmatpush1.bf16.msra.mxu0 %v871
        %1135 = vmatprep.subr.bf16.mxu0 %v879
        %1136 = vmatpush1.bf16.msra.mxu0 %v878
        %1137 = vmatprep.subr.bf16.mxu0 %v886
        %1138 = vmatpush1.bf16.msra.mxu0 %v885
        %1139 = vmatprep.subr.bf16.mxu0 %v893
        %1140 = vmatpush1.bf16.msra.mxu0 %v892
        %1141 = vmatprep.subr.bf16.mxu0 %v900
        %1142 = vmatpush1.bf16.msra.mxu0 %v899
        %1143 = vmatprep.subr.bf16.mxu0 %v907
        %1144 = vmatpush1.bf16.msra.mxu0 %v906
        %1145 = vmatprep.subr.bf16.mxu0 %v914
        %1146 = vmatpush1.bf16.msra.mxu0 %v913
        %1147 = vmatprep.subr.bf16.mxu0 %v921
        %1148 = vmatpush1.bf16.msra.mxu0 %v920
        %1149 = vmatprep.mubr.bf16.mxu0 %v456
        %1150 = vmatmul.mubr.bf16.gmra.mrb[0].mxu0 %v455
        %v1151 = vpop.f32.mrb[0].mxu0
        %v1152 = vadd.f32 0.0, %v1151
        %v1153 = vpop.f32.mrb[0].mxu0
        %v1154 = vadd.f32 0.0, %v1153
        %v1155 = vpop.f32.mrb[0].mxu0
        %v1156 = vpop.f32.mrb[0].mxu0
        %1157 = vdwg.mxu0
        %1158 = vmatprep.subr.bf16.mxu0 0
        %1159 = vmatpush1.bf16.msra.mxu0 %v817
        %1160 = vmatprep.subr.bf16.mxu0 0
        %1161 = vmatpush1.bf16.msra.mxu0 %v824
        %1162 = vmatprep.subr.bf16.mxu0 0
        %1163 = vmatpush1.bf16.msra.mxu0 %v831
        %1164 = vmatprep.subr.bf16.mxu0 0
        %1165 = vmatpush1.bf16.msra.mxu0 %v838
        %1166 = vmatprep.subr.bf16.mxu0 0
        %1167 = vmatpush1.bf16.msra.mxu0 %v845
        %1168 = vmatprep.subr.bf16.mxu0 0
        %1169 = vmatpush1.bf16.msra.mxu0 %v852
        %1170 = vmatprep.subr.bf16.mxu0 0
        %1171 = vmatpush1.bf16.msra.mxu0 %v859
        %1172 = vmatprep.subr.bf16.mxu0 0
        %1173 = vmatpush1.bf16.msra.mxu0 %v866
        %1174 = vmatprep.subr.bf16.mxu0 0
        %1175 = vmatpush1.bf16.msra.mxu0 %v873
        %1176 = vmatprep.subr.bf16.mxu0 0
        %1177 = vmatpush1.bf16.msra.mxu0 %v880
        %1178 = vmatprep.subr.bf16.mxu0 0
        %1179 = vmatpush1.bf16.msra.mxu0 %v887
        %1180 = vmatprep.subr.bf16.mxu0 0
        %1181 = vmatpush1.bf16.msra.mxu0 %v894
        %1182 = vmatprep.subr.bf16.mxu0 0
        %1183 = vmatpush1.bf16.msra.mxu0 %v901
        %1184 = vmatprep.subr.bf16.mxu0 0
        %1185 = vmatpush1.bf16.msra.mxu0 %v908
        %1186 = vmatprep.subr.bf16.mxu0 0
        %1187 = vmatpush1.bf16.msra.mxu0 %v915
        %1188 = vmatprep.subr.bf16.mxu0 0
        %1189 = vmatpush1.bf16.msra.mxu0 %v922
        %1190 = vmatprep.mubr.bf16.mxu0 %v456
        %1191 = vmatmul.mubr.bf16.gmra.mrb[0].mxu0 %v455
        %v1192 = vpop.f32.mrb[0].mxu0
        %v1193 = vadd.f32 0.0, %v1192
        %v1194 = vpop.f32.mrb[0].mxu0
        %v1195 = vpop.f32.mrb[0].mxu0
        %v1196 = vpop.f32.mrb[0].mxu0
        %1197 = vdwg.mxu0
        %v1198 = vld [vmem:[#allocation7] sm:$0xff]
        %v1199 = vld [vmem:[#allocation7 + $0x8] sm:$0xff]
        %v1200 = vld [vmem:[#allocation7 + $0x10] sm:$0xff]
        %v1201 = vmul.f32 %v1070, %v1198
        %v1202 = vmul.f32 %v1072, %v1199
        %v1203 = vmul.f32 %v1111, %v1200
        %v1204 = vld [vmem:[#allocation8] sm:$0xff]
        %v1205 = vld [vmem:[#allocation8 + $0x8] sm:$0xff]
        %v1206 = vld [vmem:[#allocation8 + $0x10] sm:$0xff]
        %v1207 = vmul.f32 %v1152, %v1204
        %v1208 = vmul.f32 %v1154, %v1205
        %v1209 = vmul.f32 %v1193, %v1206
        %v1210 = vadd.f32 %v1201, %v1207
        %v1211 = vadd.f32 %v1202, %v1208
        %v1212 = vadd.f32 %v1203, %v1209
        %1214 = vrot.lane.b32.xlu0 %v1210, 64
        %v1215 = vpop.permute.xlu0 %1214
        %1218 = vrot.lane.b32.xlu0 %v1211, 64
        %v1219 = vpop.permute.xlu0 %1218
        %1222 = vrot.lane.b32.xlu0 %v1212, 64
        %v1223 = vpop.permute.xlu0 %1222
        %1226 = vrot.lane.b32.xlu0 %v1113, 64
        %v1227 = vpop.permute.xlu0 %1226
        %v1229 = vpack.c.bf16 %v1215, %v1210
        %v1230 = vpack.c.bf16 %v1219, %v1211
        %v1231 = vpack.c.bf16 %v1212, %v1212
        %v1232 = vpack.c.bf16 %v1223, %v1223
        %vm1233 = vcmask 523264
        %v1235 = vsel %vm1233, %v1229, 0
        %v1238 = vsel %vm1233, %v1231, 0
        %1240 = vmatprep.subr.bf16.mxu0 0
        %1241 = vmatpush1.bf16.xpose.msra.mxu0 %v1238
        %1242 = vmatprep.subr.bf16.mxu0 0
        %1243 = vmatpush1.bf16.xpose.msra.mxu0 0
        %1244 = vmatprep.subr.bf16.mxu0 0
        %1245 = vmatpush1.bf16.xpose.msra.mxu0 0
        %1246 = vmatprep.subr.bf16.mxu0 0
        %1247 = vmatpush1.bf16.xpose.msra.mxu0 0
        %1248 = vmatprep.subr.bf16.mxu0 0
        %1249 = vmatpush1.bf16.xpose.msra.mxu0 0
        %1250 = vmatprep.subr.bf16.mxu0 0
        %1251 = vmatpush1.bf16.xpose.msra.mxu0 0
        %1252 = vmatprep.subr.bf16.mxu0 0
        %1253 = vmatpush1.bf16.xpose.msra.mxu0 0
        %1254 = vmatprep.subr.bf16.mxu0 0
        %1255 = vmatpush1.bf16.xpose.msra.mxu0 0
        %1256 = vmatprep.subr.bf16.mxu0 0
        %1257 = vmatpush1.bf16.xpose.msra.mxu0 0
        %1258 = vmatprep.subr.bf16.mxu0 0
        %1259 = vmatpush1.bf16.xpose.msra.mxu0 0
        %1260 = vmatprep.subr.bf16.mxu0 0
        %1261 = vmatpush1.bf16.xpose.msra.mxu0 0
        %1262 = vmatprep.subr.bf16.mxu0 0
        %1263 = vmatpush1.bf16.xpose.msra.mxu0 0
        %1264 = vmatprep.subr.bf16.mxu0 0
        %1265 = vmatpush1.bf16.xpose.msra.mxu0 0
        %1266 = vmatprep.subr.bf16.mxu0 0
        %1267 = vmatpush1.bf16.xpose.msra.mxu0 0
        %1268 = vmatprep.subr.bf16.mxu0 0
        %1269 = vmatpush1.bf16.xpose.msra.mxu0 0
        %1270 = vmatprep.subr.bf16.mxu0 0
        %1271 = vmatpush1.bf16.xpose.msra.mxu0 0
        %1272 = vmatprep.mubr.bf16.mxu0 0
        %1273 = vmatmul.mubr.bf16.gmra.mrb[0].mxu0 %v1235
        %v1274 = vpop.f32.mrb[0].mxu0
        %v1275 = vadd.f32 0.0, %v1274
        %v1276 = vpop.f32.mrb[0].mxu0
        %v1277 = vpop.f32.mrb[0].mxu0
        %v1278 = vadd.f32 0.0, %v1277
        %v1279 = vpop.f32.mrb[0].mxu0
        %1280 = vdwg.mxu0
        %v1282 = vsel %vm1233, %v1230, 0
        %v1285 = vsel %vm1233, %v1232, 0
        %1287 = vmatprep.subr.bf16.mxu0 0
        %1288 = vmatpush1.bf16.xpose.msra.mxu0 %v1285
        %1289 = vmatprep.subr.bf16.mxu0 0
        %1290 = vmatpush1.bf16.xpose.msra.mxu0 0
        %1291 = vmatprep.subr.bf16.mxu0 0
        %1292 = vmatpush1.bf16.xpose.msra.mxu0 0
        %1293 = vmatprep.subr.bf16.mxu0 0
        %1294 = vmatpush1.bf16.xpose.msra.mxu0 0
        %1295 = vmatprep.subr.bf16.mxu0 0
        %1296 = vmatpush1.bf16.xpose.msra.mxu0 0
        %1297 = vmatprep.subr.bf16.mxu0 0
        %1298 = vmatpush1.bf16.xpose.msra.mxu0 0
        %1299 = vmatprep.subr.bf16.mxu0 0
        %1300 = vmatpush1.bf16.xpose.msra.mxu0 0
        %1301 = vmatprep.subr.bf16.mxu0 0
        %1302 = vmatpush1.bf16.xpose.msra.mxu0 0
        %1303 = vmatprep.subr.bf16.mxu0 0
        %1304 = vmatpush1.bf16.xpose.msra.mxu0 0
        %1305 = vmatprep.subr.bf16.mxu0 0
        %1306 = vmatpush1.bf16.xpose.msra.mxu0 0
        %1307 = vmatprep.subr.bf16.mxu0 0
        %1308 = vmatpush1.bf16.xpose.msra.mxu0 0
        %1309 = vmatprep.subr.bf16.mxu0 0
        %1310 = vmatpush1.bf16.xpose.msra.mxu0 0
        %1311 = vmatprep.subr.bf16.mxu0 0
        %1312 = vmatpush1.bf16.xpose.msra.mxu0 0
        %1313 = vmatprep.subr.bf16.mxu0 0
        %1314 = vmatpush1.bf16.xpose.msra.mxu0 0
        %1315 = vmatprep.subr.bf16.mxu0 0
        %1316 = vmatpush1.bf16.xpose.msra.mxu0 0
        %1317 = vmatprep.subr.bf16.mxu0 0
        %1318 = vmatpush1.bf16.xpose.msra.mxu0 0
        %1319 = vmatprep.mubr.bf16.mxu0 0
        %1320 = vmatmul.mubr.bf16.gmra.mrb[0].mxu0 %v1282
        %v1321 = vpop.f32.mrb[0].mxu0
        %v1322 = vadd.f32 0.0, %v1321
        %v1323 = vpop.f32.mrb[0].mxu0
        %v1324 = vpop.f32.mrb[0].mxu0
        %v1325 = vadd.f32 0.0, %v1324
        %v1326 = vpop.f32.mrb[0].mxu0
        %1327 = vdwg.mxu0
        %v1328 = vmul.f32 %v1275, 0.125
        %v1329 = vmul.f32 %v1278, 0.125
        %v1330 = vmul.f32 %v1322, 0.125
        %v1331 = vmul.f32 %v1325, 0.125
        %v1332 = vlaneseq
        %v1333 = vshrl.u32 %v1332, 7
        %v1334 = vlaneseq
        %v1335 = vand.u32 %v1334, 127
        %vm1336 = vcmp.le.s32.totalorder %v1335, %v1333
        %v1337 = vsel %vm1336, 0.0, -3.4028235e+38
        %v1338 = vadd.f32 %v1328, %v1337
        %v1339 = vadd.f32 %v1329, %v1337
        %v1340 = vadd.f32 %v1330, %v1337
        %v1341 = vadd.f32 %v1331, %v1337
        %vm1342 = vcmask 64512
        %v1343 = vsel %vm1342, %v1338, -inf
        %1344 = vmax.xlane.f32.xlu0 %v1343
        %v1345 = vpop.xlane.xlu0 %1344
        %v1346 = vsel %vm1342, %v1339, -inf
        %1347 = vmax.xlane.f32.xlu0 %v1346
        %v1348 = vpop.xlane.xlu0 %1347
        %v1349 = vsel %vm1342, %v1340, -inf
        %1350 = vmax.xlane.f32.xlu0 %v1349
        %v1351 = vpop.xlane.xlu0 %1350
        %v1352 = vsel %vm1342, %v1341, -inf
        %1353 = vmax.xlane.f32.xlu0 %v1352
        %v1354 = vpop.xlane.xlu0 %1353
        %v1355 = vsub.f32 %v1338, %v1345
        %v1356 = vsub.f32 %v1339, %v1348
        %v1357 = vsub.f32 %v1340, %v1351
        %v1358 = vsub.f32 %v1341, %v1354
        %v1359 = vmul.f32 %v1355, 1.442695
        %v1360 = vpow.pop %v1359
        %v1361 = vmul.f32 %v1356, 1.442695
        %v1362 = vpow.pop %v1361
        %v1363 = vmul.f32 %v1357, 1.442695
        %v1364 = vpow.pop %v1363
        %v1365 = vmul.f32 %v1358, 1.442695
        %v1366 = vpow.pop %v1365
        %v1367 = vsel %vm1342, %v1360, 0.0
        %1368 = vadd.xlane.f32.xlu0 %v1367
        %v1369 = vpop.xlane.xlu0 %1368
        %v1370 = vsel %vm1342, %v1362, 0.0
        %1371 = vadd.xlane.f32.xlu0 %v1370
        %v1372 = vpop.xlane.xlu0 %1371
        %v1373 = vsel %vm1342, %v1364, 0.0
        %1374 = vadd.xlane.f32.xlu0 %v1373
        %v1375 = vpop.xlane.xlu0 %1374
        %v1376 = vsel %vm1342, %v1366, 0.0
        %1377 = vadd.xlane.f32.xlu0 %v1376
        %v1378 = vpop.xlane.xlu0 %1377
        %v1379 = vpack.c.bf16 %v1362, %v1360
        %v1380 = vpack.c.bf16 %v1366, %v1364
        %v1381 = vpack.c.bf16 %v1113, %v1113
        %v1382 = vpack.c.bf16 %v1227, %v1227
        %v1384 = vsel %vm1342, %v1379, 0
        %vm1386 = vcmask 1043456
        %v1388 = vsel %vm1386, %v1381, 0
        %1390 = vmatprep.subr.bf16.mxu0 0
        %1391 = vmatpush1.bf16.msra.mxu0 %v1388
        %1392 = vmatprep.subr.bf16.mxu0 0
        %1393 = vmatpush1.bf16.msra.mxu0 0
        %1394 = vmatprep.subr.bf16.mxu0 0
        %1395 = vmatpush1.bf16.msra.mxu0 0
        %1396 = vmatprep.subr.bf16.mxu0 0
        %1397 = vmatpush1.bf16.msra.mxu0 0
        %1398 = vmatprep.subr.bf16.mxu0 0
        %1399 = vmatpush1.bf16.msra.mxu0 0
        %1400 = vmatprep.subr.bf16.mxu0 0
        %1401 = vmatpush1.bf16.msra.mxu0 0
        %1402 = vmatprep.subr.bf16.mxu0 0
        %1403 = vmatpush1.bf16.msra.mxu0 0
        %1404 = vmatprep.subr.bf16.mxu0 0
        %1405 = vmatpush1.bf16.msra.mxu0 0
        %1406 = vmatprep.subr.bf16.mxu0 0
        %1407 = vmatpush1.bf16.msra.mxu0 0
        %1408 = vmatprep.subr.bf16.mxu0 0
        %1409 = vmatpush1.bf16.msra.mxu0 0
        %1410 = vmatprep.subr.bf16.mxu0 0
        %1411 = vmatpush1.bf16.msra.mxu0 0
        %1412 = vmatprep.subr.bf16.mxu0 0
        %1413 = vmatpush1.bf16.msra.mxu0 0
        %1414 = vmatprep.subr.bf16.mxu0 0
        %1415 = vmatpush1.bf16.msra.mxu0 0
        %1416 = vmatprep.subr.bf16.mxu0 0
        %1417 = vmatpush1.bf16.msra.mxu0 0
        %1418 = vmatprep.subr.bf16.mxu0 0
        %1419 = vmatpush1.bf16.msra.mxu0 0
        %1420 = vmatprep.subr.bf16.mxu0 0
        %1421 = vmatpush1.bf16.msra.mxu0 0
        %1422 = vmatprep.mubr.bf16.mxu0 0
        %1423 = vmatmul.mubr.bf16.gmra.mrb[0].mxu0 %v1384
        %v1424 = vpop.f32.mrb[0].mxu0
        %v1425 = vadd.f32 0.0, %v1424
        %v1426 = vpop.f32.mrb[0].mxu0
        %v1427 = vpop.f32.mrb[0].mxu0
        %v1428 = vadd.f32 0.0, %v1427
        %v1429 = vpop.f32.mrb[0].mxu0
        %1430 = vdwg.mxu0
        %v1432 = vsel %vm1342, %v1380, 0
        %v1435 = vsel %vm1386, %v1382, 0
        %1437 = vmatprep.subr.bf16.mxu0 0
        %1438 = vmatpush1.bf16.msra.mxu0 %v1435
        %1439 = vmatprep.subr.bf16.mxu0 0
        %1440 = vmatpush1.bf16.msra.mxu0 0
        %1441 = vmatprep.subr.bf16.mxu0 0
        %1442 = vmatpush1.bf16.msra.mxu0 0
        %1443 = vmatprep.subr.bf16.mxu0 0
        %1444 = vmatpush1.bf16.msra.mxu0 0
        %1445 = vmatprep.subr.bf16.mxu0 0
        %1446 = vmatpush1.bf16.msra.mxu0 0
        %1447 = vmatprep.subr.bf16.mxu0 0
        %1448 = vmatpush1.bf16.msra.mxu0 0
        %1449 = vmatprep.subr.bf16.mxu0 0
        %1450 = vmatpush1.bf16.msra.mxu0 0
        %1451 = vmatprep.subr.bf16.mxu0 0
        %1452 = vmatpush1.bf16.msra.mxu0 0
        %1453 = vmatprep.subr.bf16.mxu0 0
        %1454 = vmatpush1.bf16.msra.mxu0 0
        %1455 = vmatprep.subr.bf16.mxu0 0
        %1456 = vmatpush1.bf16.msra.mxu0 0
        %1457 = vmatprep.subr.bf16.mxu0 0
        %1458 = vmatpush1.bf16.msra.mxu0 0
        %1459 = vmatprep.subr.bf16.mxu0 0
        %1460 = vmatpush1.bf16.msra.mxu0 0
        %1461 = vmatprep.subr.bf16.mxu0 0
        %1462 = vmatpush1.bf16.msra.mxu0 0
        %1463 = vmatprep.subr.bf16.mxu0 0
        %1464 = vmatpush1.bf16.msra.mxu0 0
        %1465 = vmatprep.subr.bf16.mxu0 0
        %1466 = vmatpush1.bf16.msra.mxu0 0
        %1467 = vmatprep.subr.bf16.mxu0 0
        %1468 = vmatpush1.bf16.msra.mxu0 0
        %1469 = vmatprep.mubr.bf16.mxu0 0
        %1470 = vmatmul.mubr.bf16.gmra.mrb[0].mxu0 %v1432
        %v1471 = vpop.f32.mrb[0].mxu0
        %v1472 = vadd.f32 0.0, %v1471
        %v1473 = vpop.f32.mrb[0].mxu0
        %v1474 = vpop.f32.mrb[0].mxu0
        %v1475 = vadd.f32 0.0, %v1474
        %v1476 = vpop.f32.mrb[0].mxu0
        %1477 = vdwg.mxu0
        %v1478 = vrcp.pop %v1369
        %v1479 = vmul.f32 %v1425, %v1478
        %v1480 = vrcp.pop %v1372
        %v1481 = vmul.f32 %v1428, %v1480
        %v1482 = vrcp.pop %v1375
        %v1483 = vmul.f32 %v1472, %v1482
        %v1484 = vrcp.pop %v1378
        %v1485 = vmul.f32 %v1475, %v1484
        %v1486 = vpack.c.bf16 %v1479, %v1479
        %v1487 = vpack.c.bf16 %v1481, %v1481
        %v1488 = vpack.c.bf16 %v1483, %v1483
        %v1489 = vpack.c.bf16 %v1485, %v1485
        %v1490 = vld [vmem:[#allocation10] sm:$0xff]
        %v1491 = vld [vmem:[#allocation10 + $0x8] sm:$0xff]
        %v1492 = vld [vmem:[#allocation10 + $0x10] sm:$0xff]
        %v1493 = vld [vmem:[#allocation10 + $0x18] sm:$0xff]
        %v1494 = vld [vmem:[#allocation10 + $0x20] sm:$0xff]
        %v1495 = vld [vmem:[#allocation10 + $0x28] sm:$0xff]
        %v1496 = vld [vmem:[#allocation10 + $0x30] sm:$0xff]
        %v1497 = vld [vmem:[#allocation10 + $0x38] sm:$0xff]
        %v1498 = vld [vmem:[#allocation10 + $0x40] sm:$0xff]
        %v1499 = vld [vmem:[#allocation10 + $0x48] sm:$0xff]
        %v1500 = vld [vmem:[#allocation10 + $0x50] sm:$0xff]
        %v1501 = vld [vmem:[#allocation10 + $0x58] sm:$0xff]
        %v1502 = vld [vmem:[#allocation10 + $0x60] sm:$0xff]
        %v1503 = vld [vmem:[#allocation10 + $0x68] sm:$0xff]
        %v1504 = vld [vmem:[#allocation10 + $0x70] sm:$0xff]
        %v1505 = vld [vmem:[#allocation10 + $0x78] sm:$0xff]
        %v1506 = vld [vmem:[#allocation10 + $0x80] sm:$0xff]
        %v1507 = vld [vmem:[#allocation10 + $0x88] sm:$0xff]
        %v1508 = vld [vmem:[#allocation10 + $0x90] sm:$0xff]
        %v1509 = vld [vmem:[#allocation10 + $0x98] sm:$0xff]
        %v1510 = vld [vmem:[#allocation10 + $0xa0] sm:$0xff]
        %v1511 = vld [vmem:[#allocation10 + $0xa8] sm:$0xff]
        %v1512 = vld [vmem:[#allocation10 + $0xb0] sm:$0xff]
        %v1513 = vld [vmem:[#allocation10 + $0xb8] sm:$0xff]
        %v1514 = vld [vmem:[#allocation10 + $0xc0] sm:$0xff]
        %v1515 = vld [vmem:[#allocation10 + $0xc8] sm:$0xff]
        %v1516 = vld [vmem:[#allocation10 + $0xd0] sm:$0xff]
        %v1517 = vld [vmem:[#allocation10 + $0xd8] sm:$0xff]
        %v1518 = vld [vmem:[#allocation10 + $0xe0] sm:$0xff]
        %v1519 = vld [vmem:[#allocation10 + $0xe8] sm:$0xff]
        %v1520 = vld [vmem:[#allocation10 + $0xf0] sm:$0xff]
        %v1521 = vld [vmem:[#allocation10 + $0xf8] sm:$0xff]
        %v1530 = vunpack.c.l.b16 %v1490
        %v1531 = vunpack.c.h.b16 %v1490
        %v1532 = vunpack.c.l.b16 %v1491
        %v1533 = vunpack.c.h.b16 %v1491
        %v1534 = vunpack.c.l.b16 %v1492
        %v1535 = vunpack.c.h.b16 %v1492
        %v1536 = vunpack.c.l.b16 %v1493
        %v1537 = vunpack.c.h.b16 %v1493
        %v1538 = vunpack.c.l.b16 %v1494
        %v1539 = vunpack.c.h.b16 %v1494
        %v1540 = vunpack.c.l.b16 %v1495
        %v1541 = vunpack.c.h.b16 %v1495
        %v1542 = vunpack.c.l.b16 %v1496
        %v1543 = vunpack.c.h.b16 %v1496
        %v1544 = vunpack.c.l.b16 %v1497
        %v1545 = vunpack.c.h.b16 %v1497
        %v1546 = vpack.c.b16 %v1532, %v1530
        %v1547 = vpack.c.b16 %v1533, %v1531
        %v1548 = vpack.c.b16 %v1536, %v1534
        %v1549 = vpack.c.b16 %v1537, %v1535
        %v1550 = vpack.c.b16 %v1540, %v1538
        %v1551 = vpack.c.b16 %v1541, %v1539
        %v1552 = vpack.c.b16 %v1544, %v1542
        %v1553 = vpack.c.b16 %v1545, %v1543
        %v1563 = vsel %vm1233, %v1486, 0
        %1565 = vmatprep.subr.bf16.mxu0 %v1547
        %1566 = vmatpush1.bf16.msra.mxu0 %v1546
        %1567 = vmatprep.subr.bf16.mxu0 %v1549
        %1568 = vmatpush1.bf16.msra.mxu0 %v1548
        %1569 = vmatprep.subr.bf16.mxu0 %v1551
        %1570 = vmatpush1.bf16.msra.mxu0 %v1550
        %1571 = vmatprep.subr.bf16.mxu0 %v1553
        %1572 = vmatpush1.bf16.msra.mxu0 %v1552
        %1573 = vmatprep.subr.bf16.mxu0 0
        %1574 = vmatpush1.bf16.msra.mxu0 0
        %1575 = vmatprep.subr.bf16.mxu0 0
        %1576 = vmatpush1.bf16.msra.mxu0 0
        %1577 = vmatprep.subr.bf16.mxu0 0
        %1578 = vmatpush1.bf16.msra.mxu0 0
        %1579 = vmatprep.subr.bf16.mxu0 0
        %1580 = vmatpush1.bf16.msra.mxu0 0
        %1581 = vmatprep.subr.bf16.mxu0 0
        %1582 = vmatpush1.bf16.msra.mxu0 0
        %1583 = vmatprep.subr.bf16.mxu0 0
        %1584 = vmatpush1.bf16.msra.mxu0 0
        %1585 = vmatprep.subr.bf16.mxu0 0
        %1586 = vmatpush1.bf16.msra.mxu0 0
        %1587 = vmatprep.subr.bf16.mxu0 0
        %1588 = vmatpush1.bf16.msra.mxu0 0
        %1589 = vmatprep.subr.bf16.mxu0 0
        %1590 = vmatpush1.bf16.msra.mxu0 0
        %1591 = vmatprep.subr.bf16.mxu0 0
        %1592 = vmatpush1.bf16.msra.mxu0 0
        %1593 = vmatprep.subr.bf16.mxu0 0
        %1594 = vmatpush1.bf16.msra.mxu0 0
        %1595 = vmatprep.subr.bf16.mxu0 0
        %1596 = vmatpush1.bf16.msra.mxu0 0
        %1597 = vmatprep.mubr.bf16.mxu0 0
        %1598 = vmatmul.mubr.bf16.gmra.mrb[0].mxu0 %v1563
        %v1599 = vpop.f32.mrb[0].mxu0
        %v1600 = vadd.f32 0.0, %v1599
        %v1601 = vpop.f32.mrb[0].mxu0
        %v1602 = vadd.f32 0.0, %v1601
        %v1603 = vpop.f32.mrb[0].mxu0
        %v1604 = vpop.f32.mrb[0].mxu0
        %1605 = vdwg.mxu0
        %v1614 = vunpack.c.l.b16 %v1498
        %v1615 = vunpack.c.h.b16 %v1498
        %v1616 = vunpack.c.l.b16 %v1499
        %v1617 = vunpack.c.h.b16 %v1499
        %v1618 = vunpack.c.l.b16 %v1500
        %v1619 = vunpack.c.h.b16 %v1500
        %v1620 = vunpack.c.l.b16 %v1501
        %v1621 = vunpack.c.h.b16 %v1501
        %v1622 = vunpack.c.l.b16 %v1502
        %v1623 = vunpack.c.h.b16 %v1502
        %v1624 = vunpack.c.l.b16 %v1503
        %v1625 = vunpack.c.h.b16 %v1503
        %v1626 = vunpack.c.l.b16 %v1504
        %v1627 = vunpack.c.h.b16 %v1504
        %v1628 = vunpack.c.l.b16 %v1505
        %v1629 = vunpack.c.h.b16 %v1505
        %v1630 = vpack.c.b16 %v1616, %v1614
        %v1631 = vpack.c.b16 %v1617, %v1615
        %v1632 = vpack.c.b16 %v1620, %v1618
        %v1633 = vpack.c.b16 %v1621, %v1619
        %v1634 = vpack.c.b16 %v1624, %v1622
        %v1635 = vpack.c.b16 %v1625, %v1623
        %v1636 = vpack.c.b16 %v1628, %v1626
        %v1637 = vpack.c.b16 %v1629, %v1627
        %v1647 = vsel %vm1233, %v1487, 0
        %1649 = vmatprep.subr.bf16.mxu0 %v1631
        %1650 = vmatpush1.bf16.msra.mxu0 %v1630
        %1651 = vmatprep.subr.bf16.mxu0 %v1633
        %1652 = vmatpush1.bf16.msra.mxu0 %v1632
        %1653 = vmatprep.subr.bf16.mxu0 %v1635
        %1654 = vmatpush1.bf16.msra.mxu0 %v1634
        %1655 = vmatprep.subr.bf16.mxu0 %v1637
        %1656 = vmatpush1.bf16.msra.mxu0 %v1636
        %1657 = vmatprep.subr.bf16.mxu0 0
        %1658 = vmatpush1.bf16.msra.mxu0 0
        %1659 = vmatprep.subr.bf16.mxu0 0
        %1660 = vmatpush1.bf16.msra.mxu0 0
        %1661 = vmatprep.subr.bf16.mxu0 0
        %1662 = vmatpush1.bf16.msra.mxu0 0
        %1663 = vmatprep.subr.bf16.mxu0 0
        %1664 = vmatpush1.bf16.msra.mxu0 0
        %1665 = vmatprep.subr.bf16.mxu0 0
        %1666 = vmatpush1.bf16.msra.mxu0 0
        %1667 = vmatprep.subr.bf16.mxu0 0
        %1668 = vmatpush1.bf16.msra.mxu0 0
        %1669 = vmatprep.subr.bf16.mxu0 0
        %1670 = vmatpush1.bf16.msra.mxu0 0
        %1671 = vmatprep.subr.bf16.mxu0 0
        %1672 = vmatpush1.bf16.msra.mxu0 0
        %1673 = vmatprep.subr.bf16.mxu0 0
        %1674 = vmatpush1.bf16.msra.mxu0 0
        %1675 = vmatprep.subr.bf16.mxu0 0
        %1676 = vmatpush1.bf16.msra.mxu0 0
        %1677 = vmatprep.subr.bf16.mxu0 0
        %1678 = vmatpush1.bf16.msra.mxu0 0
        %1679 = vmatprep.subr.bf16.mxu0 0
        %1680 = vmatpush1.bf16.msra.mxu0 0
        %1681 = vmatprep.mubr.bf16.mxu0 0
        %1682 = vmatmul.mubr.bf16.gmra.mrb[0].mxu0 %v1647
        %v1683 = vpop.f32.mrb[0].mxu0
        %v1684 = vadd.f32 0.0, %v1683
        %v1685 = vpop.f32.mrb[0].mxu0
        %v1686 = vadd.f32 0.0, %v1685
        %v1687 = vpop.f32.mrb[0].mxu0
        %v1688 = vpop.f32.mrb[0].mxu0
        %1689 = vdwg.mxu0
        %v1698 = vunpack.c.l.b16 %v1506
        %v1699 = vunpack.c.h.b16 %v1506
        %v1700 = vunpack.c.l.b16 %v1507
        %v1701 = vunpack.c.h.b16 %v1507
        %v1702 = vunpack.c.l.b16 %v1508
        %v1703 = vunpack.c.h.b16 %v1508
        %v1704 = vunpack.c.l.b16 %v1509
        %v1705 = vunpack.c.h.b16 %v1509
        %v1706 = vunpack.c.l.b16 %v1510
        %v1707 = vunpack.c.h.b16 %v1510
        %v1708 = vunpack.c.l.b16 %v1511
        %v1709 = vunpack.c.h.b16 %v1511
        %v1710 = vunpack.c.l.b16 %v1512
        %v1711 = vunpack.c.h.b16 %v1512
        %v1712 = vunpack.c.l.b16 %v1513
        %v1713 = vunpack.c.h.b16 %v1513
        %v1714 = vpack.c.b16 %v1700, %v1698
        %v1715 = vpack.c.b16 %v1701, %v1699
        %v1716 = vpack.c.b16 %v1704, %v1702
        %v1717 = vpack.c.b16 %v1705, %v1703
        %v1718 = vpack.c.b16 %v1708, %v1706
        %v1719 = vpack.c.b16 %v1709, %v1707
        %v1720 = vpack.c.b16 %v1712, %v1710
        %v1721 = vpack.c.b16 %v1713, %v1711
        %v1731 = vsel %vm1233, %v1488, 0
        %1733 = vmatprep.subr.bf16.mxu0 %v1715
        %1734 = vmatpush1.bf16.msra.mxu0 %v1714
        %1735 = vmatprep.subr.bf16.mxu0 %v1717
        %1736 = vmatpush1.bf16.msra.mxu0 %v1716
        %1737 = vmatprep.subr.bf16.mxu0 %v1719
        %1738 = vmatpush1.bf16.msra.mxu0 %v1718
        %1739 = vmatprep.subr.bf16.mxu0 %v1721
        %1740 = vmatpush1.bf16.msra.mxu0 %v1720
        %1741 = vmatprep.subr.bf16.mxu0 0
        %1742 = vmatpush1.bf16.msra.mxu0 0
        %1743 = vmatprep.subr.bf16.mxu0 0
        %1744 = vmatpush1.bf16.msra.mxu0 0
        %1745 = vmatprep.subr.bf16.mxu0 0
        %1746 = vmatpush1.bf16.msra.mxu0 0
        %1747 = vmatprep.subr.bf16.mxu0 0
        %1748 = vmatpush1.bf16.msra.mxu0 0
        %1749 = vmatprep.subr.bf16.mxu0 0
        %1750 = vmatpush1.bf16.msra.mxu0 0
        %1751 = vmatprep.subr.bf16.mxu0 0
        %1752 = vmatpush1.bf16.msra.mxu0 0
        %1753 = vmatprep.subr.bf16.mxu0 0
        %1754 = vmatpush1.bf16.msra.mxu0 0
        %1755 = vmatprep.subr.bf16.mxu0 0
        %1756 = vmatpush1.bf16.msra.mxu0 0
        %1757 = vmatprep.subr.bf16.mxu0 0
        %1758 = vmatpush1.bf16.msra.mxu0 0
        %1759 = vmatprep.subr.bf16.mxu0 0
        %1760 = vmatpush1.bf16.msra.mxu0 0
        %1761 = vmatprep.subr.bf16.mxu0 0
        %1762 = vmatpush1.bf16.msra.mxu0 0
        %1763 = vmatprep.subr.bf16.mxu0 0
        %1764 = vmatpush1.bf16.msra.mxu0 0
        %1765 = vmatprep.mubr.bf16.mxu0 0
        %1766 = vmatmul.mubr.bf16.gmra.mrb[0].mxu0 %v1731
        %v1767 = vpop.f32.mrb[0].mxu0
        %v1768 = vadd.f32 0.0, %v1767
        %v1769 = vpop.f32.mrb[0].mxu0
        %v1770 = vadd.f32 0.0, %v1769
        %v1771 = vpop.f32.mrb[0].mxu0
        %v1772 = vpop.f32.mrb[0].mxu0
        %1773 = vdwg.mxu0
        %v1782 = vunpack.c.l.b16 %v1514
        %v1783 = vunpack.c.h.b16 %v1514
        %v1784 = vunpack.c.l.b16 %v1515
        %v1785 = vunpack.c.h.b16 %v1515
        %v1786 = vunpack.c.l.b16 %v1516
        %v1787 = vunpack.c.h.b16 %v1516
        %v1788 = vunpack.c.l.b16 %v1517
        %v1789 = vunpack.c.h.b16 %v1517
        %v1790 = vunpack.c.l.b16 %v1518
        %v1791 = vunpack.c.h.b16 %v1518
        %v1792 = vunpack.c.l.b16 %v1519
        %v1793 = vunpack.c.h.b16 %v1519
        %v1794 = vunpack.c.l.b16 %v1520
        %v1795 = vunpack.c.h.b16 %v1520
        %v1796 = vunpack.c.l.b16 %v1521
        %v1797 = vunpack.c.h.b16 %v1521
        %v1798 = vpack.c.b16 %v1784, %v1782
        %v1799 = vpack.c.b16 %v1785, %v1783
        %v1800 = vpack.c.b16 %v1788, %v1786
        %v1801 = vpack.c.b16 %v1789, %v1787
        %v1802 = vpack.c.b16 %v1792, %v1790
        %v1803 = vpack.c.b16 %v1793, %v1791
        %v1804 = vpack.c.b16 %v1796, %v1794
        %v1805 = vpack.c.b16 %v1797, %v1795
        %v1815 = vsel %vm1233, %v1489, 0
        %1817 = vmatprep.subr.bf16.mxu0 %v1799
        %1818 = vmatpush1.bf16.msra.mxu0 %v1798
        %1819 = vmatprep.subr.bf16.mxu0 %v1801
        %1820 = vmatpush1.bf16.msra.mxu0 %v1800
        %1821 = vmatprep.subr.bf16.mxu0 %v1803
        %1822 = vmatpush1.bf16.msra.mxu0 %v1802
        %1823 = vmatprep.subr.bf16.mxu0 %v1805
        %1824 = vmatpush1.bf16.msra.mxu0 %v1804
        %1825 = vmatprep.subr.bf16.mxu0 0
        %1826 = vmatpush1.bf16.msra.mxu0 0
        %1827 = vmatprep.subr.bf16.mxu0 0
        %1828 = vmatpush1.bf16.msra.mxu0 0
        %1829 = vmatprep.subr.bf16.mxu0 0
        %1830 = vmatpush1.bf16.msra.mxu0 0
        %1831 = vmatprep.subr.bf16.mxu0 0
        %1832 = vmatpush1.bf16.msra.mxu0 0
        %1833 = vmatprep.subr.bf16.mxu0 0
        %1834 = vmatpush1.bf16.msra.mxu0 0
        %1835 = vmatprep.subr.bf16.mxu0 0
        %1836 = vmatpush1.bf16.msra.mxu0 0
        %1837 = vmatprep.subr.bf16.mxu0 0
        %1838 = vmatpush1.bf16.msra.mxu0 0
        %1839 = vmatprep.subr.bf16.mxu0 0
        %1840 = vmatpush1.bf16.msra.mxu0 0
        %1841 = vmatprep.subr.bf16.mxu0 0
        %1842 = vmatpush1.bf16.msra.mxu0 0
        %1843 = vmatprep.subr.bf16.mxu0 0
        %1844 = vmatpush1.bf16.msra.mxu0 0
        %1845 = vmatprep.subr.bf16.mxu0 0
        %1846 = vmatpush1.bf16.msra.mxu0 0
        %1847 = vmatprep.subr.bf16.mxu0 0
        %1848 = vmatpush1.bf16.msra.mxu0 0
        %1849 = vmatprep.mubr.bf16.mxu0 0
        %1850 = vmatmul.mubr.bf16.gmra.mrb[0].mxu0 %v1815
        %v1851 = vpop.f32.mrb[0].mxu0
        %v1852 = vadd.f32 0.0, %v1851
        %v1853 = vpop.f32.mrb[0].mxu0
        %v1854 = vadd.f32 0.0, %v1853
        %v1855 = vpop.f32.mrb[0].mxu0
        %v1856 = vpop.f32.mrb[0].mxu0
        %1857 = vdwg.mxu0
        %v1858 = vadd.f32 %v1600, %v1684
        %v1859 = vadd.f32 %v1858, %v1768
        %v1860 = vadd.f32 %v1859, %v1852
        %v1861 = vadd.f32 %v1602, %v1686
        %v1862 = vadd.f32 %v1861, %v1770
        %v1863 = vadd.f32 %v1862, %v1854
        %v1864 = vld [vmem:[%s5] sm:$0x3]
        %v1866 = vlaneseq
        %v1867 = vshrl.u32 %v1866, 7
        %v1868 = vsub.s32 0, %v1867
        %v1869 = vrot.slane %v1864, %v1868
        %v1870 = vlaneseq
        %v1871 = vshrl.u32 %v1870, 7
        %v1872 = vsub.s32 1, %v1871
        %v1873 = vrot.slane %v1864, %v1872
        %v1876 = vadd.f32 %v1860, %v1869
        %v1877 = vadd.f32 %v1863, %v1873
        %1878 = vst [vmem:[%s321] sm:$0xff] %v1876
        %1879 = vst [vmem:[%s321 + $0x8] sm:$0xff] %v1877
        %s1880 = sand.u32 %s164, 1
        %s1881 = scalar_lea.sflag [#allocation4], %s1880
        %s1882 = sand.u32 %s164, 1
        %s1883 = smul.addr %s1882, 16
        %s1884 = scalar_lea.vmem [#allocation11], %s1883
        // Predicated region
        $region65: #{tpu_custom_call.1} parent=43 // pred_check
          %p1885 = pneg %p174
        $region66: #{tpu_custom_call.1} parent=43 // pred_check_branch
          %1887 = sbr.rel (%p1885) target = $region68
        $region67: #{tpu_custom_call.1} parent=43 // pred_region
          %s1889 = ssub.s32 256, 256
          %1890 = vsyncadd %s1881, %s1889
          %s1891 = smul.addr %s25, 2
          %s1892 = smul.addr %s1891, 128
          %s1893 = scalar_lea.hbm %s6, %s1892
          %s1895 = sshll.u32 %s1884, 4
          %s1896 = int_to_ptr.vmem [resolvable:$true] %s1895
          %1898 = dma.vmem_to_hbm [thread:$0]  %s1896, 256, %s1893, %s1881
        $region68: #{tpu_custom_call.1} parent=43 // pred_fallthru
          _
      $region44: #{tpu_custom_call.1} parent=5 // pred_fallthru
        _
      %p1899 = scmp.le.s32.totalorder 2, %s20
      // Predicated region
      $region69: #{tpu_custom_call.1} parent=5 // pred_check
        %p1900 = pneg %p1899
      $region70: #{tpu_custom_call.1} parent=5 // pred_check_branch
        %1902 = sbr.rel (%p1900) target = $region72
      $region71: #{tpu_custom_call.1} parent=5 // pred_region
        %s1903 = ssub.s32 %s20, 2
        // Predicated region
        $region73: #{tpu_custom_call.1} parent=71 // pred_check
          %p1904 = pneg %p180
        $region74: #{tpu_custom_call.1} parent=71 // pred_check_branch
          %1906 = sbr.rel (%p1904) target = $region76
        $region75: #{tpu_custom_call.1} parent=71 // pred_region
          %s1907 = sand.u32 %s165, 1
          %s1908 = scalar_lea.sflag [#allocation4], %s1907
          %s1909 = sand.u32 %s165, 1
          %s1910 = smul.addr %s1909, 16
          %s1911 = scalar_lea.vmem [#allocation11], %s1910
          %1912 = dma.done %s1908, 256
        $region76: #{tpu_custom_call.1} parent=71 // pred_fallthru
          _
      $region72: #{tpu_custom_call.1} parent=5 // pred_fallthru
        _
    $region6: #{tpu_custom_call.1} parent=1 // loop_footer
      %s24 = sadd.s32 1, %s20
    $region7: #{tpu_custom_call.1} parent=1 // loop_footer_branch
      %19 = sbr.rel target = $region3
    $region8: #{tpu_custom_call.1} parent=1 // loop_exit
      _
    %1913 = vsyncpa [#allocation3], 1
    %s1914 = scalar_lea.sflag [#allocation3], 1
    %1915 = vsyncpa %s1914, 1
    %1916 = vsyncpa [#allocation6], 1
    %1917 = vsyncpa [#allocation9], 1
    %1918 = vsyncpa [#allocation4], 1
    %s1919 = scalar_lea.sflag [#allocation4], 1
    %1920 = vsyncpa %s1919, 1

</llo_original>
